<compile_context>
chip_gen: v7x
topology: tpu7x:2x2x1
jax: 0.10.0
libtpu: 0.0.40
codegen_flags: <defaults>
</compile_context>

<pallas_src>
import functools

import jax
import jax.numpy as jnp
from jax import lax
from jax.experimental import pallas as pl
from jax.experimental.pallas import tpu as pltpu


def offset_attention_kernel(x_ref, wk_ref, bk_ref, wqva_ref, bqva_ref,
                            wt_ref, bt_ref, o_ref, k_scr, acc_ref,
                            *, Cq, TQ, exp_dtype):
    C = x_ref.shape[0]
    N = x_ref.shape[1]
    qi = pl.program_id(1)

    # ---- per-batch (first query tile): project K once into resident bf16 scratch ----
    @pl.when(qi == 0)
    def _project_k():
        k = jnp.dot(wk_ref[...], x_ref[...],
                    preferred_element_type=jnp.float32) + bk_ref[...]
        k_scr[...] = jnp.maximum(k, 0.0).astype(k_scr.dtype)        # folded BN + ReLU

    # ---- per-tile: project q and the ones-augmented v for this column tile of x ----
    start = pl.multiple_of(qi * TQ, TQ)
    x_t = x_ref[:, pl.ds(start, TQ)]                                 # (C, TQ) f32
    qva = jnp.maximum(
        jnp.dot(wqva_ref[...], x_t, preferred_element_type=jnp.float32)
        + bqva_ref[...], 0.0)                                        # (Cq + C + 8, TQ) f32
    q_t = qva[:Cq, :].astype(jnp.bfloat16)                           # (Cq, TQ)

    # energy[n, m] = sum_c q[c, n] * k[c, m]  (bf16 MXU inputs, f32 accumulation)
    energy = lax.dot_general(q_t, k_scr[...], (((0,), (0,)), ((), ())),
                             preferred_element_type=jnp.float32)     # (TQ, N)

    # Softmax over keys (lane dim).  Row normalization is NOT applied to the
    # (TQ, N) slab; it is folded into the x_r matmul as a small column scale.
    e_max = jnp.max(energy, axis=-1, keepdims=True)                  # (TQ, 1)
    e = jnp.exp((energy - e_max).astype(exp_dtype)).astype(jnp.bfloat16)  # (TQ, N)

    # Row sums of e as a lane vector via a ones-row MXU contraction (f32 acc):
    # no (TQ,1)->(1,TQ) transpose, no extra XLU reduce.
    ones_rows = jnp.ones((8, N), jnp.bfloat16)
    rowsum = lax.dot_general(ones_rows, e, (((1,), (1,)), ((), ())),
                             preferred_element_type=jnp.float32)     # (8, TQ), rows identical
    inv_row = pl.reciprocal(rowsum[0:1, :], approx=True)             # (1, TQ)

    # Augmented V': rows [0, C) = v * inv_row (softmax denominator folded in),
    # rows [C, C+8) = inv_row (host appended zero-weight/ones-bias projection
    # rows), so the same matmul also accumulates the attention column sums.
    v_aug = (qva[Cq:, :] * inv_row).astype(jnp.bfloat16)             # (C + 8, TQ)
    update = jnp.dot(v_aug, e, preferred_element_type=jnp.float32)   # (C + 8, N)

    @pl.when(qi == 0)
    def _store():                                                    # no zero-fill pass
        acc_ref[...] = update

    @pl.when(qi > 0)
    def _accumulate():
        acc_ref[...] += update

    # ---- finalize once per batch on the last query tile ----
    @pl.when(qi == pl.num_programs(1) - 1)
    def _finish():
        x = x_ref[...]
        xr = acc_ref[pl.ds(0, C), :]                                 # (C, N)
        colsum = acc_ref[pl.ds(C, 1), :]                             # (1, N)
        x_r = xr / (1e-9 + colsum)          # exact divide; runs once per batch
        y = jnp.maximum(
            jnp.dot(wt_ref[...], x - x_r, preferred_element_type=jnp.float32)
            + bt_ref[...], 0.0)                                      # trans_conv + BN + ReLU
        o_ref[...] = (x + y).astype(o_ref.dtype)


# ----------------------- per-generation VMEM / tiling plan -----------------------

def _tpu_vmem_capacity_bytes():
    """Per-core VMEM (v5e/v6e: 128 MiB, v7x: 64 MiB/TC; conservative default 64)."""
    try:
        info = pltpu.get_tpu_info()
        cap = getattr(info, "vmem_capacity_bytes", None)
        if cap:
            return int(cap)
    except Exception:
        pass
    try:
        kind = jax.devices()[0].device_kind.lower()
    except Exception:
        kind = ""
    if "v5" in kind or "v6" in kind:
        return 128 * 2**20
    return 64 * 2**20


def _exp_dtype_for_device():
    """bf16 EUP (exp) exists on v6e / v7x; keep f32 on v5e and older."""
    try:
        kind = jax.devices()[0].device_kind.lower()
    except Exception:
        kind = ""
    if ("v6" in kind) or ("v7" in kind) or ("7x" in kind):
        return jnp.bfloat16
    return jnp.float32


def _vmem_plan(C, Cq, N, tq=None):
    """Pick the query tile TQ and a vmem_limit_bytes that fit this chip."""
    f32, bf16 = 4, 2
    Sa = Cq + C + 8
    cap = _tpu_vmem_capacity_bytes()
    budget = int(cap * 0.85)                      # headroom for compiler temporaries

    resident = (4 * C * N * f32                   # x + out, double-buffered by pipeline
                + Cq * N * bf16                   # resident relu(K) projection (bf16)
                + (C + 8) * N * f32               # augmented x_r / colsum accumulator
                + 2 * ((Cq * C + Cq) + Sa * (C + 1) + (C * C + C)) * f32)

    def working(t):
        slabs = t * N * (f32 + f32 + bf16)        # energy, exp temp, bf16 e
        tile = Sa * t * (2 * f32 + bf16) + (C + 8) * N * f32
        return slabs + tile

    if tq is None:
        candidates = [t for t in (1024, 512, 256, 128) if N % t == 0] or [N]
        tq = candidates[-1]
        for t in candidates:                      # largest tile that fits the budget
            if resident + 2 * working(t) <= budget:
                tq = t
                break
    limit = max(32 * 2**20, min(budget, 2 * (resident + working(tq))))
    return tq, int(limit)


# --------------------------------- entry point ---------------------------------

def offset_attention(x, wq, bq, wk, bk, wv, bv, wt, bt, *, tq=None):
    B, C, N = x.shape
    Cq = wq.shape[0]
    assert C % 8 == 0 and N % 128 == 0, "pad C to x8 / N to x128 on the host"
    assert Cq % 8 == 0, "channels // ratio must be a multiple of 8 (aligned row slices)"

    tq, vmem_limit = _vmem_plan(C, Cq, N, tq)
    assert N % tq == 0
    n_q = N // tq

    # Stack q / v projections plus 8 zero-weight / ones-bias rows: the extra rows
    # give the kernel a constant-ones block so the inv_row-augmented V' needs no
    # in-kernel concatenate.
    w_qva = jnp.concatenate([wq, wv, jnp.zeros((8, C), jnp.float32)], axis=0)
    b_qva = jnp.concatenate([bq, bv, jnp.ones((8, 1), jnp.float32)], axis=0)
    Sa = Cq + C + 8

    kernel = functools.partial(offset_attention_kernel, Cq=Cq, TQ=tq,
                               exp_dtype=_exp_dtype_for_device())

    return pl.pallas_call(
        kernel,
        out_shape=jax.ShapeDtypeStruct((B, C, N), x.dtype),
        grid_spec=pltpu.PrefetchScalarGridSpec(
            num_scalar_prefetch=0,
            # NOTE: the q axis carries the accumulator so it must stay "arbitrary";
            # on v7x (2 TCs/chip) keep B a multiple of 2 for megacore balance.
            grid=(B, n_q),
            in_specs=[
                pl.BlockSpec((None, C, N), lambda b, q: (b, 0, 0)),   # x (resident over q)
                pl.BlockSpec((Cq, C), lambda b, q: (0, 0)),           # k_conv  (BN folded)
                pl.BlockSpec((Cq, 1), lambda b, q: (0, 0)),
                pl.BlockSpec((Sa, C), lambda b, q: (0, 0)),           # stacked q/v(+ones) conv
                pl.BlockSpec((Sa, 1), lambda b, q: (0, 0)),
                pl.BlockSpec((C, C), lambda b, q: (0, 0)),            # trans_conv (BN folded)
                pl.BlockSpec((C, 1), lambda b, q: (0, 0)),
            ],
            out_specs=pl.BlockSpec((None, C, N), lambda b, q: (b, 0, 0)),
            scratch_shapes=[
                pltpu.VMEM((Cq, N), jnp.bfloat16),      # resident relu(K) projection
                pltpu.VMEM((C + 8, N), jnp.float32),    # rows [0,C): x_r, rows [C,C+8): colsum
            ],
        ),
        compiler_params=pltpu.CompilerParams(
            dimension_semantics=("parallel", "arbitrary"),
            vmem_limit_bytes=vmem_limit,
        ),
    )(x, wk, bk, w_qva, b_qva, wt, bt)


# ----------------------- host-side parameter setup (glue) -----------------------

def init_bn(key, n):
    k1, k2, k3, k4 = jax.random.split(key, 4)
    gamma = 1.0 + jax.random.uniform(k1, (n,), jnp.float32, -0.1, 0.1)
    beta = jax.random.uniform(k2, (n,), jnp.float32, -0.1, 0.1)
    mean = jax.random.uniform(k3, (n,), jnp.float32, -0.1, 0.1)
    var = jax.random.uniform(k4, (n,), jnp.float32, 0.5, 1.5)
    return gamma, beta, mean, var


def fold_bn(w, b, bn, eps=1e-5):
    """bn(W @ x + b) == W_eff @ x + b_eff  (eval-mode BN)."""
    gamma, beta, mean, var = bn
    scale = gamma / jnp.sqrt(var + eps)
    w_eff = scale[:, None] * w
    b_eff = scale * (b - mean) + beta
    return w_eff, b_eff[:, None]


def make_params(key, C, ratio=8):
    Cq = C // ratio
    ks = jax.random.split(key, 9)
    u = lambda k, shape, s=0.1: jax.random.uniform(k, shape, jnp.float32, -s, s)

    w_qk = u(ks[0], (Cq, C))                 # q_conv.weight tied to k_conv.weight
    w_v, b_v = u(ks[1], (C, C)), u(ks[2], (C,))
    w_t, b_t = u(ks[3], (C, C)), u(ks[4], (C,))

    bn1 = init_bn(ks[5], Cq)
    bn2 = init_bn(ks[6], Cq)
    bn3 = init_bn(ks[7], C)
    bnA = init_bn(ks[8], C)

    zero_q = jnp.zeros((Cq,), jnp.float32)
    wq, bq = fold_bn(w_qk, zero_q, bn1)
    wk, bk = fold_bn(w_qk, zero_q, bn2)
    wv, bv = fold_bn(w_v, b_v, bn3)
    wt, bt = fold_bn(w_t, b_t, bnA)
    return wq, bq, wk, bk, wv, bv, wt, bt


def reference(x, params):
    """Pure-JAX f32 reference mirroring the PyTorch forward (folded eval-mode BN)."""
    wq, bq, wk, bk, wv, bv, wt, bt = params
    relu = lambda a: jnp.maximum(a, 0.0)
    q = relu(jnp.einsum('qc,bcn->bqn', wq, x) + bq[None])      # (B, Cq, N)
    k = relu(jnp.einsum('qc,bcn->bqn', wk, x) + bk[None])      # (B, Cq, N)
    v = relu(jnp.einsum('oc,bcn->bon', wv, x) + bv[None])      # (B, C, N)
    energy = jnp.einsum('bqn,bqm->bnm', q, k)                  # (B, N, N)
    attn = jax.nn.softmax(energy, axis=-1)
    attn = attn / (1e-9 + jnp.sum(attn, axis=1, keepdims=True))
    x_r = jnp.einsum('bcn,bnm->bcm', v, attn)                  # (B, C, N)
    y = relu(jnp.einsum('oc,bcn->bon', wt, x - x_r) + bt[None])
    return x + y


if __name__ == "__main__":
    key = jax.random.PRNGKey(0)
    kx1, kp1, kx2, kp2 = jax.random.split(key, 4)

    # Primary small config: channels=64, ratio=8 -> Cq=8; N=128 points (1 query tile).
    B, C, N = 2, 64, 128
    x = jax.random.normal(kx1, (B, C, N), jnp.float32)
    params = make_params(kp1, C, ratio=8)

    out = jax.block_until_ready(offset_attention(x, *params))
    ref = reference(x, params)
    assert out.shape == (B, C, N)
    err = float(jnp.max(jnp.abs(out - ref)))
    # bf16 MXU inputs + approx per-row reciprocal -> bf16-level tolerance.
    assert jnp.allclose(out, ref, atol=2e-2, rtol=2e-2), f"max abs err = {err}"

    # Second config exercises the multi-tile query accumulation path (2 tiles of 128).
    B2, C2, N2 = 2, 64, 256
    x2 = jax.random.normal(kx2, (B2, C2, N2), jnp.float32)
    params2 = make_params(kp2, C2, ratio=8)
    out2 = jax.block_until_ready(offset_attention(x2, *params2, tq=128))
    ref2 = reference(x2, params2)
    err2 = float(jnp.max(jnp.abs(out2 - ref2)))
    assert jnp.allclose(out2, ref2, atol=2e-2, rtol=2e-2), f"max abs err = {err2}"

    print("KERNEL_OK")
</pallas_src>

<mosaic_0001>
module attributes {stable_mosaic.version = 11 : i64} {
  func.func @offset_attention_kernel(%arg0: i32, %arg1: i32, %arg2: memref<1x64x128xf32, #tpu.memory_space<vmem>>, %arg3: memref<8x64xf32, #tpu.memory_space<vmem>>, %arg4: memref<8x1xf32, #tpu.memory_space<vmem>>, %arg5: memref<80x64xf32, #tpu.memory_space<vmem>>, %arg6: memref<80x1xf32, #tpu.memory_space<vmem>>, %arg7: memref<64x64xf32, #tpu.memory_space<vmem>>, %arg8: memref<64x1xf32, #tpu.memory_space<vmem>>, %arg9: memref<1x64x128xf32, #tpu.memory_space<vmem>>, %arg10: memref<8x128xbf16, #tpu.memory_space<vmem>>, %arg11: memref<72x128xf32, #tpu.memory_space<vmem>>) attributes {dimension_semantics = [#tpu.dimension_semantics<parallel>, #tpu.dimension_semantics<arbitrary>], iteration_bounds = array<i64: 2, 1>, scalar_prefetch = 0 : i64, scratch_operands = 2 : i64, tpu.core_type = #tpu.core_type<tc>, window_params = [{transform_indices = @transform_0, window_bounds = array<i64: 1, 64, 128>}, {pipeline_mode = #tpu.pipeline_mode<synchronous>, transform_indices = @transform_1, window_bounds = array<i64: 8, 64>}, {pipeline_mode = #tpu.pipeline_mode<synchronous>, transform_indices = @transform_2, window_bounds = array<i64: 8, 1>}, {pipeline_mode = #tpu.pipeline_mode<synchronous>, transform_indices = @transform_3, window_bounds = array<i64: 80, 64>}, {pipeline_mode = #tpu.pipeline_mode<synchronous>, transform_indices = @transform_4, window_bounds = array<i64: 80, 1>}, {pipeline_mode = #tpu.pipeline_mode<synchronous>, transform_indices = @transform_5, window_bounds = array<i64: 64, 64>}, {pipeline_mode = #tpu.pipeline_mode<synchronous>, transform_indices = @transform_6, window_bounds = array<i64: 64, 1>}, {transform_indices = @transform_7, window_bounds = array<i64: 1, 64, 128>}]} {
    %c0_i32 = arith.constant 0 : i32
    %0 = arith.cmpi eq, %arg1, %c0_i32 : i32
    %1 = arith.extui %0 : i1 to i32
    %c0_i32_0 = arith.constant 0 : i32
    %2 = arith.cmpi ne, %1, %c0_i32_0 : i32
    scf.if %2 {
      %c0_20 = arith.constant 0 : index
      %c0_21 = arith.constant 0 : index
      %43 = vector.load %arg3[%c0_20, %c0_21] : memref<8x64xf32, #tpu.memory_space<vmem>>, vector<8x64xf32>
      %c0_22 = arith.constant 0 : index
      %c0_23 = arith.constant 0 : index
      %c0_24 = arith.constant 0 : index
      %44 = vector.load %arg2[%c0_22, %c0_23, %c0_24] : memref<1x64x128xf32, #tpu.memory_space<vmem>>, vector<1x64x128xf32>
      %45 = vector.shape_cast %44 : vector<1x64x128xf32> to vector<64x128xf32>
      %cst_25 = arith.constant dense<0.000000e+00> : vector<8x128xf32>
      %46 = tpu.matmul %43, %45, %cst_25 {dimension_numbers = #tpu.dot_dimension_numbers<[1], [0], [0], [1], [0, 0, 1, 1], [], []>} : vector<8x64xf32>, vector<64x128xf32>, vector<8x128xf32> -> vector<8x128xf32>
      %c0_26 = arith.constant 0 : index
      %c0_27 = arith.constant 0 : index
      %47 = vector.load %arg4[%c0_26, %c0_27] : memref<8x1xf32, #tpu.memory_space<vmem>>, vector<8x1xf32>
      %48 = vector.broadcast %47 : vector<8x1xf32> to vector<8x128xf32>
      %49 = arith.addf %46, %48 : vector<8x128xf32>
      %cst_28 = arith.constant 0.000000e+00 : f32
      %50 = vector.broadcast %cst_28 : f32 to vector<8x128xf32>
      %51 = arith.maximumf %49, %50 : vector<8x128xf32>
      %52 = arith.truncf %51 : vector<8x128xf32> to vector<8x128xbf16>
      %c0_29 = arith.constant 0 : index
      %c0_30 = arith.constant 0 : index
      %53 = vector.load %arg10[%c0_29, %c0_30] : memref<8x128xbf16, #tpu.memory_space<vmem>>, vector<8x128xbf16>
      tpu.vector_store %arg10[%c0_29, %c0_30], %52 {strides = array<i32>} : memref<8x128xbf16, #tpu.memory_space<vmem>>, vector<8x128xbf16>,
    } else {
    }
    %c128_i32 = arith.constant 128 : i32
    %3 = arith.muli %arg1, %c128_i32 : i32
    %4 = tpu.assume_multiple %3, 128 : i32
    %c0 = arith.constant 0 : index
    %c0_1 = arith.constant 0 : index
    %5 = arith.index_cast %4 : i32 to index
    %6 = vector.load %arg2[%c0, %c0_1, %5] : memref<1x64x128xf32, #tpu.memory_space<vmem>>, vector<1x64x128xf32>
    %7 = vector.shape_cast %6 : vector<1x64x128xf32> to vector<64x128xf32>
    %c0_2 = arith.constant 0 : index
    %c0_3 = arith.constant 0 : index
    %8 = vector.load %arg5[%c0_2, %c0_3] : memref<80x64xf32, #tpu.memory_space<vmem>>, vector<80x64xf32>
    %cst = arith.constant dense<0.000000e+00> : vector<80x128xf32>
    %9 = tpu.matmul %8, %7, %cst {dimension_numbers = #tpu.dot_dimension_numbers<[1], [0], [0], [1], [0, 0, 1, 1], [], []>} : vector<80x64xf32>, vector<64x128xf32>, vector<80x128xf32> -> vector<80x128xf32>
    %c0_4 = arith.constant 0 : index
    %c0_5 = arith.constant 0 : index
    %10 = vector.load %arg6[%c0_4, %c0_5] : memref<80x1xf32, #tpu.memory_space<vmem>>, vector<80x1xf32>
    %11 = vector.broadcast %10 : vector<80x1xf32> to vector<80x128xf32>
    %12 = arith.addf %9, %11 : vector<80x128xf32>
    %cst_6 = arith.constant 0.000000e+00 : f32
    %13 = vector.broadcast %cst_6 : f32 to vector<80x128xf32>
    %14 = arith.maximumf %12, %13 : vector<80x128xf32>
    %15 = vector.extract_strided_slice %14 {offsets = [0, 0], sizes = [8, 128], strides = [1, 1]} : vector<80x128xf32> to vector<8x128xf32>
    %16 = arith.truncf %15 : vector<8x128xf32> to vector<8x128xbf16>
    %c0_7 = arith.constant 0 : index
    %c0_8 = arith.constant 0 : index
    %17 = vector.load %arg10[%c0_7, %c0_8] : memref<8x128xbf16, #tpu.memory_space<vmem>>, vector<8x128xbf16>
    %cst_9 = arith.constant dense<0.000000e+00> : vector<128x128xf32>
    %18 = tpu.matmul %16, %17, %cst_9 {dimension_numbers = #tpu.dot_dimension_numbers<[0], [0], [1], [1], [0, 1, 1, 1], [], []>} : vector<8x128xbf16>, vector<8x128xbf16>, vector<128x128xf32> -> vector<128x128xf32>
    %cst_10 = arith.constant dense<0xFF800000> : vector<128xf32>
    %19 = vector.multi_reduction <maximumf>, %18, %cst_10 [1] : vector<128x128xf32> to vector<128xf32>
    %20 = vector.shape_cast %19 : vector<128xf32> to vector<128x1xf32>
    %21 = vector.broadcast %20 : vector<128x1xf32> to vector<128x128xf32>
    %22 = arith.subf %18, %21 : vector<128x128xf32>
    %23 = math.exp %22 : vector<128x128xf32>
    %24 = arith.truncf %23 : vector<128x128xf32> to vector<128x128xbf16>
    %cst_11 = arith.constant 1.000000e+00 : bf16
    %25 = vector.broadcast %cst_11 : bf16 to vector<8x128xbf16>
    %cst_12 = arith.constant dense<0.000000e+00> : vector<8x128xf32>
    %26 = tpu.matmul %25, %24, %cst_12 {dimension_numbers = #tpu.dot_dimension_numbers<[1], [1], [0], [0], [0, 0, 1, 0], [], []>} : vector<8x128xbf16>, vector<128x128xbf16>, vector<8x128xf32> -> vector<8x128xf32>
    %27 = vector.extract_strided_slice %26 {offsets = [0, 0], sizes = [1, 128], strides = [1, 1]} : vector<8x128xf32> to vector<1x128xf32>
    %28 = tpu.reciprocal %27 {approx = true} : vector<1x128xf32> -> vector<1x128xf32>
    %29 = vector.extract_strided_slice %14 {offsets = [8, 0], sizes = [72, 128], strides = [1, 1]} : vector<80x128xf32> to vector<72x128xf32>
    %30 = vector.broadcast %28 : vector<1x128xf32> to vector<72x128xf32>
    %31 = arith.mulf %29, %30 : vector<72x128xf32>
    %32 = arith.truncf %31 : vector<72x128xf32> to vector<72x128xbf16>
    %cst_13 = arith.constant dense<0.000000e+00> : vector<72x128xf32>
    %33 = tpu.matmul %32, %24, %cst_13 {dimension_numbers = #tpu.dot_dimension_numbers<[1], [0], [0], [1], [0, 0, 1, 1], [], []>} : vector<72x128xbf16>, vector<128x128xbf16>, vector<72x128xf32> -> vector<72x128xf32>
    %c0_i32_14 = arith.constant 0 : i32
    %34 = arith.cmpi eq, %arg1, %c0_i32_14 : i32
    %35 = arith.extui %34 : i1 to i32
    %c0_i32_15 = arith.constant 0 : i32
    %36 = arith.cmpi ne, %35, %c0_i32_15 : i32
    scf.if %36 {
      %c0_20 = arith.constant 0 : index
      %c0_21 = arith.constant 0 : index
      %43 = vector.load %arg11[%c0_20, %c0_21] : memref<72x128xf32, #tpu.memory_space<vmem>>, vector<72x128xf32>
      tpu.vector_store %arg11[%c0_20, %c0_21], %33 {strides = array<i32>} : memref<72x128xf32, #tpu.memory_space<vmem>>, vector<72x128xf32>,
    } else {
    }
    %c0_i32_16 = arith.constant 0 : i32
    %37 = arith.cmpi sgt, %arg1, %c0_i32_16 : i32
    %38 = arith.extui %37 : i1 to i32
    %c0_i32_17 = arith.constant 0 : i32
    %39 = arith.cmpi ne, %38, %c0_i32_17 : i32
    scf.if %39 {
      %c0_20 = arith.constant 0 : index
      %c0_21 = arith.constant 0 : index
      %43 = vector.load %arg11[%c0_20, %c0_21] : memref<72x128xf32, #tpu.memory_space<vmem>>, vector<72x128xf32>
      %44 = arith.addf %43, %33 : vector<72x128xf32>
      %c0_22 = arith.constant 0 : index
      %c0_23 = arith.constant 0 : index
      %45 = vector.load %arg11[%c0_22, %c0_23] : memref<72x128xf32, #tpu.memory_space<vmem>>, vector<72x128xf32>
      tpu.vector_store %arg11[%c0_22, %c0_23], %44 {strides = array<i32>} : memref<72x128xf32, #tpu.memory_space<vmem>>, vector<72x128xf32>,
    } else {
    }
    %c0_i32_18 = arith.constant 0 : i32
    %40 = arith.cmpi eq, %arg1, %c0_i32_18 : i32
    %41 = arith.extui %40 : i1 to i32
    %c0_i32_19 = arith.constant 0 : i32
    %42 = arith.cmpi ne, %41, %c0_i32_19 : i32
    scf.if %42 {
      %c0_20 = arith.constant 0 : index
      %c0_21 = arith.constant 0 : index
      %c0_22 = arith.constant 0 : index
      %43 = vector.load %arg2[%c0_20, %c0_21, %c0_22] : memref<1x64x128xf32, #tpu.memory_space<vmem>>, vector<1x64x128xf32>
      %44 = vector.shape_cast %43 : vector<1x64x128xf32> to vector<64x128xf32>
      %c0_23 = arith.constant 0 : index
      %c0_24 = arith.constant 0 : index
      %45 = vector.load %arg11[%c0_23, %c0_24] : memref<72x128xf32, #tpu.memory_space<vmem>>, vector<64x128xf32>
      %c64 = arith.constant 64 : index
      %c0_25 = arith.constant 0 : index
      %46 = vector.load %arg11[%c64, %c0_25] : memref<72x128xf32, #tpu.memory_space<vmem>>, vector<1x128xf32>
      %cst_26 = arith.constant 9.99999971E-10 : f32
      %47 = vector.broadcast %cst_26 : f32 to vector<1x128xf32>
      %48 = arith.addf %47, %46 : vector<1x128xf32>
      %49 = vector.broadcast %48 : vector<1x128xf32> to vector<64x128xf32>
      %50 = arith.divf %45, %49 : vector<64x128xf32>
      %c0_27 = arith.constant 0 : index
      %c0_28 = arith.constant 0 : index
      %51 = vector.load %arg7[%c0_27, %c0_28] : memref<64x64xf32, #tpu.memory_space<vmem>>, vector<64x64xf32>
      %52 = arith.subf %44, %50 : vector<64x128xf32>
      %cst_29 = arith.constant dense<0.000000e+00> : vector<64x128xf32>
      %53 = tpu.matmul %51, %52, %cst_29 {dimension_numbers = #tpu.dot_dimension_numbers<[1], [0], [0], [1], [0, 0, 1, 1], [], []>} : vector<64x64xf32>, vector<64x128xf32>, vector<64x128xf32> -> vector<64x128xf32>
      %c0_30 = arith.constant 0 : index
      %c0_31 = arith.constant 0 : index
      %54 = vector.load %arg8[%c0_30, %c0_31] : memref<64x1xf32, #tpu.memory_space<vmem>>, vector<64x1xf32>
      %55 = vector.broadcast %54 : vector<64x1xf32> to vector<64x128xf32>
      %56 = arith.addf %53, %55 : vector<64x128xf32>
      %cst_32 = arith.constant 0.000000e+00 : f32
      %57 = vector.broadcast %cst_32 : f32 to vector<64x128xf32>
      %58 = arith.maximumf %56, %57 : vector<64x128xf32>
      %59 = arith.addf %44, %58 : vector<64x128xf32>
      %c0_33 = arith.constant 0 : index
      %c0_34 = arith.constant 0 : index
      %c0_35 = arith.constant 0 : index
      %60 = vector.load %arg9[%c0_33, %c0_34, %c0_35] : memref<1x64x128xf32, #tpu.memory_space<vmem>>, vector<1x64x128xf32>
      %61 = vector.shape_cast %60 : vector<1x64x128xf32> to vector<64x128xf32>
      %62 = vector.shape_cast %59 : vector<64x128xf32> to vector<1x64x128xf32>
      tpu.vector_store %arg9[%c0_33, %c0_34, %c0_35], %62 {strides = array<i32>} : memref<1x64x128xf32, #tpu.memory_space<vmem>>, vector<1x64x128xf32>,
    } else {
    }
    return
  }
  func.func @transform_0(%arg0: i32, %arg1: i32) -> (i32, i32, i32) {
    %c0_i32 = arith.constant 0 : i32
    %c0_i32_0 = arith.constant 0 : i32
    %c0_i32_1 = arith.constant 0 : i32
    return %arg0, %c0_i32, %c0_i32_0 : i32, i32, i32
  }
  func.func @transform_1(%arg0: i32, %arg1: i32) -> (i32, i32) {
    %c0_i32 = arith.constant 0 : i32
    %c0_i32_0 = arith.constant 0 : i32
    %c0_i32_1 = arith.constant 0 : i32
    return %c0_i32, %c0_i32_0 : i32, i32
  }
  func.func @transform_2(%arg0: i32, %arg1: i32) -> (i32, i32) {
    %c0_i32 = arith.constant 0 : i32
    %c0_i32_0 = arith.constant 0 : i32
    %c0_i32_1 = arith.constant 0 : i32
    return %c0_i32, %c0_i32_0 : i32, i32
  }
  func.func @transform_3(%arg0: i32, %arg1: i32) -> (i32, i32) {
    %c0_i32 = arith.constant 0 : i32
    %c0_i32_0 = arith.constant 0 : i32
    %c0_i32_1 = arith.constant 0 : i32
    return %c0_i32, %c0_i32_0 : i32, i32
  }
  func.func @transform_4(%arg0: i32, %arg1: i32) -> (i32, i32) {
    %c0_i32 = arith.constant 0 : i32
    %c0_i32_0 = arith.constant 0 : i32
    %c0_i32_1 = arith.constant 0 : i32
    return %c0_i32, %c0_i32_0 : i32, i32
  }
  func.func @transform_5(%arg0: i32, %arg1: i32) -> (i32, i32) {
    %c0_i32 = arith.constant 0 : i32
    %c0_i32_0 = arith.constant 0 : i32
    %c0_i32_1 = arith.constant 0 : i32
    return %c0_i32, %c0_i32_0 : i32, i32
  }
  func.func @transform_6(%arg0: i32, %arg1: i32) -> (i32, i32) {
    %c0_i32 = arith.constant 0 : i32
    %c0_i32_0 = arith.constant 0 : i32
    %c0_i32_1 = arith.constant 0 : i32
    return %c0_i32, %c0_i32_0 : i32, i32
  }
  func.func @transform_7(%arg0: i32, %arg1: i32) -> (i32, i32, i32) {
    %c0_i32 = arith.constant 0 : i32
    %c0_i32_0 = arith.constant 0 : i32
    %c0_i32_1 = arith.constant 0 : i32
    return %arg0, %c0_i32, %c0_i32_0 : i32, i32, i32
  }
}

</mosaic_0001>

<llo_original>
// kernel: tpu_custom_call.1
$region0: #{tpu_custom_call.1}
  #allocation0 [shape = 'u32[]', space=smem, size = 0x4, offset = 0x4, fixed_abs, tag = 'smem constant byte address 0x4 - core index']
  #allocation1 [shape = 'u32[144,128]{1,0:T(1,128)}', space=vmem, size = 0x12000, scoped, tag = 'internal scratch']
  #allocation2 [shape = 'bf16[8,128]{1,0:T(8,128)(2,1)}', space=vmem, size = 0x800, scoped, tag = 'scratch operand']
  #allocation3 [shape = 'f32[72,128]{1,0:T(8,128)}', space=vmem, size = 0x9000, scoped, tag = 'scratch operand']
  %s0 = inlined_call_operand.vmem [shape: f32[2,64,128], index: 0, kind: input, shape index: {}]
  %s1 = inlined_call_operand.vmem [shape: f32[8,64], index: 1, kind: input, shape index: {}]
  %s2 = inlined_call_operand.vmem [shape: f32[8,1], index: 2, kind: input, shape index: {}]
  %s3 = inlined_call_operand.vmem [shape: f32[80,64], index: 3, kind: input, shape index: {}]
  %s4 = inlined_call_operand.vmem [shape: f32[80,1], index: 4, kind: input, shape index: {}]
  %s5 = inlined_call_operand.vmem [shape: f32[64,64], index: 5, kind: input, shape index: {}]
  %s6 = inlined_call_operand.vmem [shape: f32[64,1], index: 6, kind: input, shape index: {}]
  %s7 = inlined_call_operand.hbm [shape: f32[2,64,128], index: 7, kind: output, shape index: {}]
  %s8 = sld [smem:[#allocation0]]
  $region77: #{tpu_custom_call.1} parent=0
    _
  %s10 = ssub.s32 1, %s8
  %s11 = scalar_select 0, %s10, %s8
  $region1: #{tpu_custom_call.1} parent=0
    #allocation4 [shape = 'u8[65536]{0}', space=vmem, size = 0x10000, scoped, tag = 'output window, operand 0']
    #allocation5 [shape = 's32[2]{0}', space=sflag, size = 0x8, scoped, tag = 'scoped memory for tpu_custom_call.1']
    %12 = vsyncpa [#allocation5], 0
    %s13 = scalar_lea.sflag [#allocation5], 1
    %14 = vsyncpa %s13, 0
    loop: start=0, step=1, limit=4
    $region2: #{tpu_custom_call.1} parent=1 // loop_pre_header
      _
    $region3: #{tpu_custom_call.1} parent=1 // loop_header
      %s16 = sphi 0, %s20
      %p17 = scmp.ge.s32.totalorder %s16, 4
      %s23 = sphi 0, %s35
      %s24 = sphi 0, %s31
      %s25 = sphi 0, %s23
      %s26 = sphi 0, %s24
      %s27 = sphi 0, %s25
      %s28 = sphi 0, %s26
      %s38 = sphi 0, %s40
      %s41 = sphi 0, %s38
      %s42 = sphi 0, %s41
      %s58 = sphi 0, %s42
      %s62 = sphi 0, %s62
      %s64 = sphi 0, %s62
      %s65 = sphi 0, %s64
      %s79 = sphi 0, %s65
      %s83 = sphi 0, %s83
      %s85 = sphi 0, %s83
      %s86 = sphi 0, %s85
      %s100 = sphi 0, %s86
      %s104 = sphi 0, %s104
      %s106 = sphi 0, %s104
      %s107 = sphi 0, %s106
      %s121 = sphi 0, %s107
      %s125 = sphi 0, %s125
      %s127 = sphi 0, %s125
      %s128 = sphi 0, %s127
      %s142 = sphi 0, %s128
      %s146 = sphi 0, %s146
      %s148 = sphi 0, %s146
      %s149 = sphi 0, %s148
      %s163 = sphi 0, %s149
      %s167 = sphi 0, %s167
      %s169 = sphi 0, %s167
      %s170 = sphi 0, %s169
      %s184 = sphi 0, %s170
      %s190 = sphi 0, %s192
      %s193 = sphi 0, %s190
      %s194 = sphi 0, %s193
      %s210 = sphi 0, %s194
    $region4: #{tpu_custom_call.1} parent=1 // loop_header_branch
      %19 = sbr.rel (%p17) target = $region8
    $region5: #{tpu_custom_call.1} parent=1 // loop_body
      %s21 = ssub.s32 %s16, 1
      %s22 = ssub.s32 %s16, 2
      %s29 = sadd.s32 1, %s24
      %p30 = scmp.ge.s32.totalorder %s29, 1
      %s31 = scalar_select %p30, 0, %s29
      %s32 = sadd.s32 1, %s23
      %s33 = scalar_select %p30, %s32, %s23
      %p34 = scmp.ge.s32.totalorder %s33, 2
      %s35 = scalar_select %p34, 0, %s33
      %s36 = ssub.s32 %s23, %s35
      %p37 = scmp.eq.s32.totalorder %s36, 0
      %s39 = sadd.s32 %s38, 1
      %s40 = scalar_select %p37, %s38, %s39
      %p43 = pneg %p37
      %p44 = scmp.eq.s32.totalorder %s16, 1
      %p45 = por %p43, %p44
      %p46 = scmp.ne.s32.totalorder %s38, %s41
      %p47 = scmp.eq.s32.totalorder %s16, 0
      %p48 = por %p46, %p47
      %p49 = scmp.ne.s32.totalorder %s38, %s41
      %p50 = scmp.eq.s32.totalorder %s21, 1
      %p51 = por %p49, %p50
      %p52 = scmp.ne.s32.totalorder %s41, %s42
      %p53 = scmp.eq.s32.totalorder %s21, 0
      %p54 = por %p52, %p53
      %p55 = scmp.ne.s32.totalorder %s41, %s42
      %p56 = scmp.eq.s32.totalorder %s22, 1
      %p57 = por %p55, %p56
      %p59 = scmp.ne.s32.totalorder %s42, %s58
      %p60 = scmp.eq.s32.totalorder %s22, 0
      %p61 = por %p59, %p60
      %s63 = sadd.s32 %s62, 1
      %p66 = scmp.eq.s32.totalorder %s16, 1
      %p67 = scmp.ne.s32.totalorder %s62, %s64
      %p68 = scmp.eq.s32.totalorder %s16, 0
      %p69 = por %p67, %p68
      %p70 = scmp.ne.s32.totalorder %s62, %s64
      %p71 = scmp.eq.s32.totalorder %s21, 1
      %p72 = por %p70, %p71
      %p73 = scmp.ne.s32.totalorder %s64, %s65
      %p74 = scmp.eq.s32.totalorder %s21, 0
      %p75 = por %p73, %p74
      %p76 = scmp.ne.s32.totalorder %s64, %s65
      %p77 = scmp.eq.s32.totalorder %s22, 1
      %p78 = por %p76, %p77
      %p80 = scmp.ne.s32.totalorder %s65, %s79
      %p81 = scmp.eq.s32.totalorder %s22, 0
      %p82 = por %p80, %p81
      %s84 = sadd.s32 %s83, 1
      %p87 = scmp.eq.s32.totalorder %s16, 1
      %p88 = scmp.ne.s32.totalorder %s83, %s85
      %p89 = scmp.eq.s32.totalorder %s16, 0
      %p90 = por %p88, %p89
      %p91 = scmp.ne.s32.totalorder %s83, %s85
      %p92 = scmp.eq.s32.totalorder %s21, 1
      %p93 = por %p91, %p92
      %p94 = scmp.ne.s32.totalorder %s85, %s86
      %p95 = scmp.eq.s32.totalorder %s21, 0
      %p96 = por %p94, %p95
      %p97 = scmp.ne.s32.totalorder %s85, %s86
      %p98 = scmp.eq.s32.totalorder %s22, 1
      %p99 = por %p97, %p98
      %p101 = scmp.ne.s32.totalorder %s86, %s100
      %p102 = scmp.eq.s32.totalorder %s22, 0
      %p103 = por %p101, %p102
      %s105 = sadd.s32 %s104, 1
      %p108 = scmp.eq.s32.totalorder %s16, 1
      %p109 = scmp.ne.s32.totalorder %s104, %s106
      %p110 = scmp.eq.s32.totalorder %s16, 0
      %p111 = por %p109, %p110
      %p112 = scmp.ne.s32.totalorder %s104, %s106
      %p113 = scmp.eq.s32.totalorder %s21, 1
      %p114 = por %p112, %p113
      %p115 = scmp.ne.s32.totalorder %s106, %s107
      %p116 = scmp.eq.s32.totalorder %s21, 0
      %p117 = por %p115, %p116
      %p118 = scmp.ne.s32.totalorder %s106, %s107
      %p119 = scmp.eq.s32.totalorder %s22, 1
      %p120 = por %p118, %p119
      %p122 = scmp.ne.s32.totalorder %s107, %s121
      %p123 = scmp.eq.s32.totalorder %s22, 0
      %p124 = por %p122, %p123
      %s126 = sadd.s32 %s125, 1
      %p129 = scmp.eq.s32.totalorder %s16, 1
      %p130 = scmp.ne.s32.totalorder %s125, %s127
      %p131 = scmp.eq.s32.totalorder %s16, 0
      %p132 = por %p130, %p131
      %p133 = scmp.ne.s32.totalorder %s125, %s127
      %p134 = scmp.eq.s32.totalorder %s21, 1
      %p135 = por %p133, %p134
      %p136 = scmp.ne.s32.totalorder %s127, %s128
      %p137 = scmp.eq.s32.totalorder %s21, 0
      %p138 = por %p136, %p137
      %p139 = scmp.ne.s32.totalorder %s127, %s128
      %p140 = scmp.eq.s32.totalorder %s22, 1
      %p141 = por %p139, %p140
      %p143 = scmp.ne.s32.totalorder %s128, %s142
      %p144 = scmp.eq.s32.totalorder %s22, 0
      %p145 = por %p143, %p144
      %s147 = sadd.s32 %s146, 1
      %p150 = scmp.eq.s32.totalorder %s16, 1
      %p151 = scmp.ne.s32.totalorder %s146, %s148
      %p152 = scmp.eq.s32.totalorder %s16, 0
      %p153 = por %p151, %p152
      %p154 = scmp.ne.s32.totalorder %s146, %s148
      %p155 = scmp.eq.s32.totalorder %s21, 1
      %p156 = por %p154, %p155
      %p157 = scmp.ne.s32.totalorder %s148, %s149
      %p158 = scmp.eq.s32.totalorder %s21, 0
      %p159 = por %p157, %p158
      %p160 = scmp.ne.s32.totalorder %s148, %s149
      %p161 = scmp.eq.s32.totalorder %s22, 1
      %p162 = por %p160, %p161
      %p164 = scmp.ne.s32.totalorder %s149, %s163
      %p165 = scmp.eq.s32.totalorder %s22, 0
      %p166 = por %p164, %p165
      %s168 = sadd.s32 %s167, 1
      %p171 = scmp.eq.s32.totalorder %s16, 1
      %p172 = scmp.ne.s32.totalorder %s167, %s169
      %p173 = scmp.eq.s32.totalorder %s16, 0
      %p174 = por %p172, %p173
      %p175 = scmp.ne.s32.totalorder %s167, %s169
      %p176 = scmp.eq.s32.totalorder %s21, 1
      %p177 = por %p175, %p176
      %p178 = scmp.ne.s32.totalorder %s169, %s170
      %p179 = scmp.eq.s32.totalorder %s21, 0
      %p180 = por %p178, %p179
      %p181 = scmp.ne.s32.totalorder %s169, %s170
      %p182 = scmp.eq.s32.totalorder %s22, 1
      %p183 = por %p181, %p182
      %p185 = scmp.ne.s32.totalorder %s170, %s184
      %p186 = scmp.eq.s32.totalorder %s22, 0
      %p187 = por %p185, %p186
      %s188 = ssub.s32 %s23, %s35
      %p189 = scmp.eq.s32.totalorder %s188, 0
      %s191 = sadd.s32 %s190, 1
      %s192 = scalar_select %p189, %s190, %s191
      %p195 = pneg %p189
      %p196 = scmp.eq.s32.totalorder %s16, 1
      %p197 = por %p195, %p196
      %p198 = scmp.ne.s32.totalorder %s190, %s193
      %p199 = scmp.eq.s32.totalorder %s16, 0
      %p200 = por %p198, %p199
      %p201 = scmp.ne.s32.totalorder %s190, %s193
      %p202 = scmp.eq.s32.totalorder %s21, 1
      %p203 = por %p201, %p202
      %p204 = scmp.ne.s32.totalorder %s193, %s194
      %p205 = scmp.eq.s32.totalorder %s21, 0
      %p206 = por %p204, %p205
      %p207 = scmp.ne.s32.totalorder %s193, %s194
      %p208 = scmp.eq.s32.totalorder %s22, 1
      %p209 = por %p207, %p208
      %p211 = scmp.ne.s32.totalorder %s194, %s210
      %p212 = scmp.eq.s32.totalorder %s22, 0
      %p213 = por %p211, %p212
      %p214 = scmp.le.s32.totalorder 1, %s16
      %p215 = scmp.lt.s32.totalorder %s16, 3
      %p216 = pnand %p214, %p215
      %p217 = pneg %p216
      // Predicated region
      $region9: #{tpu_custom_call.1} parent=5 // pred_check
        _
      $region10: #{tpu_custom_call.1} parent=5 // pred_check_branch
        %219 = sbr.rel (%p216) target = $region12
      $region11: #{tpu_custom_call.1} parent=5 // pred_region
        %s220 = ssub.s32 %s16, 1
        // Predicated region
        $region13: #{tpu_custom_call.1} parent=11 // pred_check
          %p221 = pneg %p75
        $region14: #{tpu_custom_call.1} parent=11 // pred_check_branch
          %223 = sbr.rel (%p221) target = $region16
        $region15: #{tpu_custom_call.1} parent=11 // pred_region
          _
        $region16: #{tpu_custom_call.1} parent=11 // pred_fallthru
          _
        // Predicated region
        $region17: #{tpu_custom_call.1} parent=11 // pred_check
          %p224 = pneg %p96
        $region18: #{tpu_custom_call.1} parent=11 // pred_check_branch
          %226 = sbr.rel (%p224) target = $region20
        $region19: #{tpu_custom_call.1} parent=11 // pred_region
          _
        $region20: #{tpu_custom_call.1} parent=11 // pred_fallthru
          _
        // Predicated region
        $region21: #{tpu_custom_call.1} parent=11 // pred_check
          %p227 = pneg %p117
        $region22: #{tpu_custom_call.1} parent=11 // pred_check_branch
          %229 = sbr.rel (%p227) target = $region24
        $region23: #{tpu_custom_call.1} parent=11 // pred_region
          _
        $region24: #{tpu_custom_call.1} parent=11 // pred_fallthru
          _
        // Predicated region
        $region25: #{tpu_custom_call.1} parent=11 // pred_check
          %p230 = pneg %p138
        $region26: #{tpu_custom_call.1} parent=11 // pred_check_branch
          %232 = sbr.rel (%p230) target = $region28
        $region27: #{tpu_custom_call.1} parent=11 // pred_region
          _
        $region28: #{tpu_custom_call.1} parent=11 // pred_fallthru
          _
        // Predicated region
        $region29: #{tpu_custom_call.1} parent=11 // pred_check
          %p233 = pneg %p159
        $region30: #{tpu_custom_call.1} parent=11 // pred_check_branch
          %235 = sbr.rel (%p233) target = $region32
        $region31: #{tpu_custom_call.1} parent=11 // pred_region
          _
        $region32: #{tpu_custom_call.1} parent=11 // pred_fallthru
          _
        // Predicated region
        $region33: #{tpu_custom_call.1} parent=11 // pred_check
          %p236 = pneg %p180
        $region34: #{tpu_custom_call.1} parent=11 // pred_check_branch
          %238 = sbr.rel (%p236) target = $region36
        $region35: #{tpu_custom_call.1} parent=11 // pred_region
          _
        $region36: #{tpu_custom_call.1} parent=11 // pred_fallthru
          _
      $region12: #{tpu_custom_call.1} parent=5 // pred_fallthru
        _
      %p239 = scmp.lt.s32.totalorder %s16, 2
      // Predicated region
      $region37: #{tpu_custom_call.1} parent=5 // pred_check
        %p240 = pneg %p239
      $region38: #{tpu_custom_call.1} parent=5 // pred_check_branch
        %242 = sbr.rel (%p240) target = $region40
      $region39: #{tpu_custom_call.1} parent=5 // pred_region
        // Predicated region
        $region41: #{tpu_custom_call.1} parent=39 // pred_check
          %p243 = pneg %p48
        $region42: #{tpu_custom_call.1} parent=39 // pred_check_branch
          %245 = sbr.rel (%p243) target = $region44
        $region43: #{tpu_custom_call.1} parent=39 // pred_region
          %p246 = scmp.lt.s32.totalorder %s23, 1
          %s247 = scalar_select %p246, %s23, 1
          %s248 = smul.addr %s247, 8
          %s249 = smul.addr %s248, 8
          %s250 = scalar_lea.vmem %s0, %s249
        $region44: #{tpu_custom_call.1} parent=39 // pred_fallthru
          _
      $region40: #{tpu_custom_call.1} parent=5 // pred_fallthru
        _
      %p251 = scmp.le.s32.totalorder 1, %s16
      %p252 = scmp.lt.s32.totalorder %s16, 3
      %p253 = pnand %p251, %p252
      %p254 = pneg %p253
      // Predicated region
      $region45: #{tpu_custom_call.1} parent=5 // pred_check
        _
      $region46: #{tpu_custom_call.1} parent=5 // pred_check_branch
        %256 = sbr.rel (%p253) target = $region48
      $region47: #{tpu_custom_call.1} parent=5 // pred_region
        %s257 = ssub.s32 %s16, 1
        %p258 = scmp.lt.s32.totalorder %s25, 1
        %s259 = scalar_select %p258, %s25, 1
        %s260 = smul.addr %s259, 8
        %s261 = smul.addr %s260, 8
        %s262 = scalar_lea.vmem %s0, %s261
        %p263 = pneg %p54
        %p264 = pneg %p51
        %p265 = pneg %p75
        %p266 = pneg %p72
        %p267 = pneg %p96
        %p268 = pneg %p93
        %p269 = pneg %p117
        %p270 = pneg %p114
        %p271 = pneg %p138
        %p272 = pneg %p135
        %p273 = pneg %p159
        %p274 = pneg %p156
        %p275 = pneg %p180
        %p276 = pneg %p177
        %p277 = pneg %p206
        %p278 = pneg %p203
        %s279 = sand.u32 %s193, 1
        %s280 = scalar_lea.sflag [#allocation5], %s279
        %s281 = sand.u32 %s193, 1
        %s282 = smul.addr %s281, 64
        %s283 = scalar_lea.vmem [#allocation4], %s282
        %p284 = scmp.lt.s32.totalorder %s25, 1
        %s285 = scalar_select %p284, %s25, 1
        %s286 = smul.addr %s285, 8
        %s287 = smul.addr %s286, 8
        %s288 = scalar_lea.vmem %s0, %s287
        %p291 = scmp.eq.s32.totalorder %s26, 0
        // Predicated region
        $region49: #{tpu_custom_call.1} parent=47 // pred_check
          %p292 = pneg %p291
        $region50: #{tpu_custom_call.1} parent=47 // pred_check_branch
          %294 = sbr.rel (%p292) target = $region52
        $region51: #{tpu_custom_call.1} parent=47 // pred_region
          %v295 = vld [vmem:[%s1] sm:$0xff]
          %v296 = vld [vmem:[%s288] sm:$0xff]
          %v297 = vld [vmem:[%s288 + $0x8] sm:$0xff]
          %v298 = vld [vmem:[%s288 + $0x10] sm:$0xff]
          %v299 = vld [vmem:[%s288 + $0x18] sm:$0xff]
          %v300 = vld [vmem:[%s288 + $0x20] sm:$0xff]
          %v301 = vld [vmem:[%s288 + $0x28] sm:$0xff]
          %v302 = vld [vmem:[%s288 + $0x30] sm:$0xff]
          %v303 = vld [vmem:[%s288 + $0x38] sm:$0xff]
          %v304 = vld [vmem:[%s2] sm:$0xff]
          %306 = vset.pattern.permute.xlu0 0
          %307 = vperm.xlu0 %306, %v304
          %v308 = vpop.permute.xlu0 %307
          %vm310 = vcmask 523264
          %v312 = vsel %vm310, %v295, 0
          %314 = vmatprep.subr.mxu0 0.0
          %315 = vmatpush1.msra.mxu0 %v296
          %316 = vmatprep.subr.mxu0 0.0
          %317 = vmatpush1.msra.mxu0 %v297
          %318 = vmatprep.subr.mxu0 0.0
          %319 = vmatpush1.msra.mxu0 %v298
          %320 = vmatprep.subr.mxu0 0.0
          %321 = vmatpush1.msra.mxu0 %v299
          %322 = vmatprep.subr.mxu0 0.0
          %323 = vmatpush1.msra.mxu0 %v300
          %324 = vmatprep.subr.mxu0 0.0
          %325 = vmatpush1.msra.mxu0 %v301
          %326 = vmatprep.subr.mxu0 0.0
          %327 = vmatpush1.msra.mxu0 %v302
          %328 = vmatprep.subr.mxu0 0.0
          %329 = vmatpush1.msra.mxu0 %v303
          %330 = vmatprep.subr.mxu0 0.0
          %331 = vmatpush1.msra.mxu0 0.0
          %332 = vmatprep.subr.mxu0 0.0
          %333 = vmatpush1.msra.mxu0 0.0
          %334 = vmatprep.subr.mxu0 0.0
          %335 = vmatpush1.msra.mxu0 0.0
          %336 = vmatprep.subr.mxu0 0.0
          %337 = vmatpush1.msra.mxu0 0.0
          %338 = vmatprep.subr.mxu0 0.0
          %339 = vmatpush1.msra.mxu0 0.0
          %340 = vmatprep.subr.mxu0 0.0
          %341 = vmatpush1.msra.mxu0 0.0
          %342 = vmatprep.subr.mxu0 0.0
          %343 = vmatpush1.msra.mxu0 0.0
          %344 = vmatprep.subr.mxu0 0.0
          %345 = vmatpush1.msra.mxu0 0.0
          %346 = vmatprep.subr.mxu0 0.0
          %347 = vmatpush1.msra.mxu0 0.0
          %348 = vmatprep.subr.mxu0 0.0
          %349 = vmatpush1.msra.mxu0 0.0
          %350 = vmatprep.subr.mxu0 0.0
          %351 = vmatpush1.msra.mxu0 0.0
          %352 = vmatprep.subr.mxu0 0.0
          %353 = vmatpush1.msra.mxu0 0.0
          %354 = vmatprep.subr.mxu0 0.0
          %355 = vmatpush1.msra.mxu0 0.0
          %356 = vmatprep.subr.mxu0 0.0
          %357 = vmatpush1.msra.mxu0 0.0
          %358 = vmatprep.subr.mxu0 0.0
          %359 = vmatpush1.msra.mxu0 0.0
          %360 = vmatprep.subr.mxu0 0.0
          %361 = vmatpush1.msra.mxu0 0.0
          %362 = vmatprep.subr.mxu0 0.0
          %363 = vmatpush1.msra.mxu0 0.0
          %364 = vmatprep.subr.mxu0 0.0
          %365 = vmatpush1.msra.mxu0 0.0
          %366 = vmatprep.subr.mxu0 0.0
          %367 = vmatpush1.msra.mxu0 0.0
          %368 = vmatprep.subr.mxu0 0.0
          %369 = vmatpush1.msra.mxu0 0.0
          %370 = vmatprep.subr.mxu0 0.0
          %371 = vmatpush1.msra.mxu0 0.0
          %372 = vmatprep.subr.mxu0 0.0
          %373 = vmatpush1.msra.mxu0 0.0
          %374 = vmatprep.subr.mxu0 0.0
          %375 = vmatpush1.msra.mxu0 0.0
          %376 = vmatprep.subr.mxu0 0.0
          %377 = vmatpush1.msra.mxu0 0.0
          %378 = vmatprep.mubr.f32.mxu0 0.0
          %379 = vmatmul.mubr.f32.gmra.mrb[0].mxu0 %v312
          %v380 = vpop.f32.mrb[0].mxu0
          %v381 = vadd.f32 %v308, %v380
          %v382 = vpop.f32.mrb[0].mxu0
          %383 = vdwg.mxu0
          %v384 = vmax.f32 %v381, 0.0
          %v385 = vpack.c.bf16 %v384, %v384
          %386 = vst [vmem:[#allocation2] sm:$0xf] %v385
        $region52: #{tpu_custom_call.1} parent=47 // pred_fallthru
          _
        %s387 = smul.u32 %s26, 128
        %s388 = sshra.s32 %s387, 7
        %s389 = sand.u32 %s387, 127
        %s390 = scalar_lea.vmem %s288, %s388
        %v391 = vld [vmem:[%s390] sm:$0xff]
        %v392 = vld [vmem:[%s390 + $0x8] sm:$0xff]
        %v393 = vld [vmem:[%s390 + $0x10] sm:$0xff]
        %v394 = vld [vmem:[%s390 + $0x18] sm:$0xff]
        %v395 = vld [vmem:[%s390 + $0x20] sm:$0xff]
        %v396 = vld [vmem:[%s390 + $0x28] sm:$0xff]
        %v397 = vld [vmem:[%s390 + $0x30] sm:$0xff]
        %v398 = vld [vmem:[%s390 + $0x38] sm:$0xff]
        %v399 = vld [vmem:[%s3] sm:$0xff]
        %v400 = vld [vmem:[%s3 + $0x8] sm:$0xff]
        %v401 = vld [vmem:[%s3 + $0x10] sm:$0xff]
        %v402 = vld [vmem:[%s3 + $0x18] sm:$0xff]
        %v403 = vld [vmem:[%s3 + $0x20] sm:$0xff]
        %v404 = vld [vmem:[%s3 + $0x28] sm:$0xff]
        %v405 = vld [vmem:[%s3 + $0x30] sm:$0xff]
        %v406 = vld [vmem:[%s3 + $0x38] sm:$0xff]
        %v407 = vld [vmem:[%s3 + $0x40] sm:$0xff]
        %v408 = vld [vmem:[%s3 + $0x48] sm:$0xff]
        %v409 = vld [vmem:[%s4] sm:$0xff]
        %v410 = vld [vmem:[%s4 + $0x8] sm:$0xff]
        %v411 = vld [vmem:[%s4 + $0x10] sm:$0xff]
        %v412 = vld [vmem:[%s4 + $0x18] sm:$0xff]
        %v413 = vld [vmem:[%s4 + $0x20] sm:$0xff]
        %v414 = vld [vmem:[%s4 + $0x28] sm:$0xff]
        %v415 = vld [vmem:[%s4 + $0x30] sm:$0xff]
        %v416 = vld [vmem:[%s4 + $0x38] sm:$0xff]
        %v417 = vld [vmem:[%s4 + $0x40] sm:$0xff]
        %v418 = vld [vmem:[%s4 + $0x48] sm:$0xff]
        %420 = vset.pattern.permute.xlu0 0
        %421 = vperm.xlu0 %420, %v409
        %v422 = vpop.permute.xlu0 %421
        %425 = vset.pattern.permute.xlu0 0
        %426 = vperm.xlu0 %425, %v410
        %v427 = vpop.permute.xlu0 %426
        %430 = vset.pattern.permute.xlu0 0
        %431 = vperm.xlu0 %430, %v411
        %v432 = vpop.permute.xlu0 %431
        %435 = vset.pattern.permute.xlu0 0
        %436 = vperm.xlu0 %435, %v412
        %v437 = vpop.permute.xlu0 %436
        %440 = vset.pattern.permute.xlu0 0
        %441 = vperm.xlu0 %440, %v413
        %v442 = vpop.permute.xlu0 %441
        %445 = vset.pattern.permute.xlu0 0
        %446 = vperm.xlu0 %445, %v414
        %v447 = vpop.permute.xlu0 %446
        %450 = vset.pattern.permute.xlu0 0
        %451 = vperm.xlu0 %450, %v415
        %v452 = vpop.permute.xlu0 %451
        %455 = vset.pattern.permute.xlu0 0
        %456 = vperm.xlu0 %455, %v416
        %v457 = vpop.permute.xlu0 %456
        %460 = vset.pattern.permute.xlu0 0
        %461 = vperm.xlu0 %460, %v417
        %v462 = vpop.permute.xlu0 %461
        %465 = vset.pattern.permute.xlu0 0
        %466 = vperm.xlu0 %465, %v418
        %v467 = vpop.permute.xlu0 %466
        %vm469 = vcmask 523264
        %v471 = vsel %vm469, %v399, 0
        %v474 = vsel %vm469, %v400, 0
        %v477 = vsel %vm469, %v401, 0
        %v480 = vsel %vm469, %v402, 0
        %v483 = vsel %vm469, %v403, 0
        %v486 = vsel %vm469, %v404, 0
        %v489 = vsel %vm469, %v405, 0
        %v492 = vsel %vm469, %v406, 0
        %v495 = vsel %vm469, %v407, 0
        %v498 = vsel %vm469, %v408, 0
        %500 = vmatprep.subr.mxu0 0.0
        %501 = vmatpush1.msra.mxu0 %v391
        %502 = vmatprep.subr.mxu0 0.0
        %503 = vmatpush1.msra.mxu0 %v392
        %504 = vmatprep.subr.mxu0 0.0
        %505 = vmatpush1.msra.mxu0 %v393
        %506 = vmatprep.subr.mxu0 0.0
        %507 = vmatpush1.msra.mxu0 %v394
        %508 = vmatprep.subr.mxu0 0.0
        %509 = vmatpush1.msra.mxu0 %v395
        %510 = vmatprep.subr.mxu0 0.0
        %511 = vmatpush1.msra.mxu0 %v396
        %512 = vmatprep.subr.mxu0 0.0
        %513 = vmatpush1.msra.mxu0 %v397
        %514 = vmatprep.subr.mxu0 0.0
        %515 = vmatpush1.msra.mxu0 %v398
        %516 = vmatprep.subr.mxu0 0.0
        %517 = vmatpush1.msra.mxu0 0.0
        %518 = vmatprep.subr.mxu0 0.0
        %519 = vmatpush1.msra.mxu0 0.0
        %520 = vmatprep.subr.mxu0 0.0
        %521 = vmatpush1.msra.mxu0 0.0
        %522 = vmatprep.subr.mxu0 0.0
        %523 = vmatpush1.msra.mxu0 0.0
        %524 = vmatprep.subr.mxu0 0.0
        %525 = vmatpush1.msra.mxu0 0.0
        %526 = vmatprep.subr.mxu0 0.0
        %527 = vmatpush1.msra.mxu0 0.0
        %528 = vmatprep.subr.mxu0 0.0
        %529 = vmatpush1.msra.mxu0 0.0
        %530 = vmatprep.subr.mxu0 0.0
        %531 = vmatpush1.msra.mxu0 0.0
        %532 = vmatprep.subr.mxu0 0.0
        %533 = vmatpush1.msra.mxu0 0.0
        %534 = vmatprep.subr.mxu0 0.0
        %535 = vmatpush1.msra.mxu0 0.0
        %536 = vmatprep.subr.mxu0 0.0
        %537 = vmatpush1.msra.mxu0 0.0
        %538 = vmatprep.subr.mxu0 0.0
        %539 = vmatpush1.msra.mxu0 0.0
        %540 = vmatprep.subr.mxu0 0.0
        %541 = vmatpush1.msra.mxu0 0.0
        %542 = vmatprep.subr.mxu0 0.0
        %543 = vmatpush1.msra.mxu0 0.0
        %544 = vmatprep.subr.mxu0 0.0
        %545 = vmatpush1.msra.mxu0 0.0
        %546 = vmatprep.subr.mxu0 0.0
        %547 = vmatpush1.msra.mxu0 0.0
        %548 = vmatprep.subr.mxu0 0.0
        %549 = vmatpush1.msra.mxu0 0.0
        %550 = vmatprep.subr.mxu0 0.0
        %551 = vmatpush1.msra.mxu0 0.0
        %552 = vmatprep.subr.mxu0 0.0
        %553 = vmatpush1.msra.mxu0 0.0
        %554 = vmatprep.subr.mxu0 0.0
        %555 = vmatpush1.msra.mxu0 0.0
        %556 = vmatprep.subr.mxu0 0.0
        %557 = vmatpush1.msra.mxu0 0.0
        %558 = vmatprep.subr.mxu0 0.0
        %559 = vmatpush1.msra.mxu0 0.0
        %560 = vmatprep.subr.mxu0 0.0
        %561 = vmatpush1.msra.mxu0 0.0
        %562 = vmatprep.subr.mxu0 0.0
        %563 = vmatpush1.msra.mxu0 0.0
        %564 = vmatprep.mubr.f32.mxu0 0.0
        %565 = vmatmul.mubr.f32.gmra.mrb[0].mxu0 %v471
        %v566 = vpop.f32.mrb[0].mxu0
        %v567 = vadd.f32 %v422, %v566
        %v568 = vpop.f32.mrb[0].mxu0
        %569 = vmatprep.mubr.f32.mxu0 0.0
        %570 = vmatmul.mubr.f32.gmra.mrb[0].mxu0 %v474
        %v571 = vpop.f32.mrb[0].mxu0
        %v572 = vadd.f32 %v427, %v571
        %v573 = vpop.f32.mrb[0].mxu0
        %574 = vmatprep.mubr.f32.mxu0 0.0
        %575 = vmatmul.mubr.f32.gmra.mrb[0].mxu0 %v477
        %v576 = vpop.f32.mrb[0].mxu0
        %v577 = vadd.f32 %v432, %v576
        %v578 = vpop.f32.mrb[0].mxu0
        %579 = vmatprep.mubr.f32.mxu0 0.0
        %580 = vmatmul.mubr.f32.gmra.mrb[0].mxu0 %v480
        %v581 = vpop.f32.mrb[0].mxu0
        %v582 = vadd.f32 %v437, %v581
        %v583 = vpop.f32.mrb[0].mxu0
        %584 = vmatprep.mubr.f32.mxu0 0.0
        %585 = vmatmul.mubr.f32.gmra.mrb[0].mxu0 %v483
        %v586 = vpop.f32.mrb[0].mxu0
        %v587 = vadd.f32 %v442, %v586
        %v588 = vpop.f32.mrb[0].mxu0
        %589 = vmatprep.mubr.f32.mxu0 0.0
        %590 = vmatmul.mubr.f32.gmra.mrb[0].mxu0 %v486
        %v591 = vpop.f32.mrb[0].mxu0
        %v592 = vadd.f32 %v447, %v591
        %v593 = vpop.f32.mrb[0].mxu0
        %594 = vmatprep.mubr.f32.mxu0 0.0
        %595 = vmatmul.mubr.f32.gmra.mrb[0].mxu0 %v489
        %v596 = vpop.f32.mrb[0].mxu0
        %v597 = vadd.f32 %v452, %v596
        %v598 = vpop.f32.mrb[0].mxu0
        %599 = vmatprep.mubr.f32.mxu0 0.0
        %600 = vmatmul.mubr.f32.gmra.mrb[0].mxu0 %v492
        %v601 = vpop.f32.mrb[0].mxu0
        %v602 = vadd.f32 %v457, %v601
        %v603 = vpop.f32.mrb[0].mxu0
        %604 = vmatprep.mubr.f32.mxu0 0.0
        %605 = vmatmul.mubr.f32.gmra.mrb[0].mxu0 %v495
        %v606 = vpop.f32.mrb[0].mxu0
        %v607 = vadd.f32 %v462, %v606
        %v608 = vpop.f32.mrb[0].mxu0
        %609 = vmatprep.mubr.f32.mxu0 0.0
        %610 = vmatmul.mubr.f32.gmra.mrb[0].mxu0 %v498
        %v611 = vpop.f32.mrb[0].mxu0
        %v612 = vadd.f32 %v467, %v611
        %v613 = vpop.f32.mrb[0].mxu0
        %614 = vdwg.mxu0
        %v615 = vmax.f32 %v567, 0.0
        %v616 = vmax.f32 %v572, 0.0
        %v617 = vmax.f32 %v577, 0.0
        %v618 = vmax.f32 %v582, 0.0
        %v619 = vmax.f32 %v587, 0.0
        %v620 = vmax.f32 %v592, 0.0
        %v621 = vmax.f32 %v597, 0.0
        %v622 = vmax.f32 %v602, 0.0
        %v623 = vmax.f32 %v607, 0.0
        %v624 = vmax.f32 %v612, 0.0
        %v625 = vpack.c.bf16 %v615, %v615
        %v626 = vld [vmem:[#allocation2] sm:$0xf]
        %627 = vxpose.xlu0.c.b16.start [1/8] %v625, 128
        %628 = vxpose.xlu0.c.b16.cont [2/8] 0, 128
        %629 = vxpose.xlu0.c.b16.cont [3/8] 0, 128
        %630 = vxpose.xlu0.c.b16.cont [4/8] 0, 128
        %631 = vxpose.xlu0.c.b16.cont [5/8] 0, 128
        %632 = vxpose.xlu0.c.b16.cont [6/8] 0, 128
        %633 = vxpose.xlu0.c.b16.cont [7/8] 0, 128
        %634 = vxpose.xlu0.c.b16.end [8/8] 0, 128
        %v635 = vpop.trf.xlu0
        %v636 = vpop.trf.xlu0
        %v637 = vpop.trf.xlu0
        %v638 = vpop.trf.xlu0
        %v639 = vpop.trf.xlu0
        %v640 = vpop.trf.xlu0
        %v641 = vpop.trf.xlu0
        %v642 = vpop.trf.xlu0
        %vm643 = vcmask 64512
        %v645 = vsel %vm643, %v635, 0
        %v648 = vsel %vm643, %v636, 0
        %v651 = vsel %vm643, %v637, 0
        %v654 = vsel %vm643, %v638, 0
        %v657 = vsel %vm643, %v639, 0
        %v660 = vsel %vm643, %v640, 0
        %v663 = vsel %vm643, %v641, 0
        %v666 = vsel %vm643, %v642, 0
        %vm668 = vcmask 1043456
        %v670 = vsel %vm668, %v626, 0
        %672 = vmatprep.subr.bf16.mxu0 0
        %673 = vmatpush1.bf16.msra.mxu0 %v670
        %674 = vmatprep.subr.bf16.mxu0 0
        %675 = vmatpush1.bf16.msra.mxu0 0
        %676 = vmatprep.subr.bf16.mxu0 0
        %677 = vmatpush1.bf16.msra.mxu0 0
        %678 = vmatprep.subr.bf16.mxu0 0
        %679 = vmatpush1.bf16.msra.mxu0 0
        %680 = vmatprep.subr.bf16.mxu0 0
        %681 = vmatpush1.bf16.msra.mxu0 0
        %682 = vmatprep.subr.bf16.mxu0 0
        %683 = vmatpush1.bf16.msra.mxu0 0
        %684 = vmatprep.subr.bf16.mxu0 0
        %685 = vmatpush1.bf16.msra.mxu0 0
        %686 = vmatprep.subr.bf16.mxu0 0
        %687 = vmatpush1.bf16.msra.mxu0 0
        %688 = vmatprep.subr.bf16.mxu0 0
        %689 = vmatpush1.bf16.msra.mxu0 0
        %690 = vmatprep.subr.bf16.mxu0 0
        %691 = vmatpush1.bf16.msra.mxu0 0
        %692 = vmatprep.subr.bf16.mxu0 0
        %693 = vmatpush1.bf16.msra.mxu0 0
        %694 = vmatprep.subr.bf16.mxu0 0
        %695 = vmatpush1.bf16.msra.mxu0 0
        %696 = vmatprep.subr.bf16.mxu0 0
        %697 = vmatpush1.bf16.msra.mxu0 0
        %698 = vmatprep.subr.bf16.mxu0 0
        %699 = vmatpush1.bf16.msra.mxu0 0
        %700 = vmatprep.subr.bf16.mxu0 0
        %701 = vmatpush1.bf16.msra.mxu0 0
        %702 = vmatprep.subr.bf16.mxu0 0
        %703 = vmatpush1.bf16.msra.mxu0 0
        %704 = vmatprep.mubr.bf16.mxu0 0
        %705 = vmatmul.mubr.bf16.gmra.mrb[0].mxu0 %v645
        %v706 = vpop.f32.mrb[0].mxu0
        %v707 = vadd.f32 0.0, %v706
        %v708 = vpop.f32.mrb[0].mxu0
        %v709 = vpop.f32.mrb[0].mxu0
        %v710 = vadd.f32 0.0, %v709
        %v711 = vpop.f32.mrb[0].mxu0
        %712 = vmatprep.mubr.bf16.mxu0 0
        %713 = vmatmul.mubr.bf16.gmra.mrb[0].mxu0 %v648
        %v714 = vpop.f32.mrb[0].mxu0
        %v715 = vadd.f32 0.0, %v714
        %v716 = vpop.f32.mrb[0].mxu0
        %v717 = vpop.f32.mrb[0].mxu0
        %v718 = vadd.f32 0.0, %v717
        %v719 = vpop.f32.mrb[0].mxu0
        %720 = vmatprep.mubr.bf16.mxu0 0
        %721 = vmatmul.mubr.bf16.gmra.mrb[0].mxu0 %v651
        %v722 = vpop.f32.mrb[0].mxu0
        %v723 = vadd.f32 0.0, %v722
        %v724 = vpop.f32.mrb[0].mxu0
        %v725 = vpop.f32.mrb[0].mxu0
        %v726 = vadd.f32 0.0, %v725
        %v727 = vpop.f32.mrb[0].mxu0
        %728 = vmatprep.mubr.bf16.mxu0 0
        %729 = vmatmul.mubr.bf16.gmra.mrb[0].mxu0 %v654
        %v730 = vpop.f32.mrb[0].mxu0
        %v731 = vadd.f32 0.0, %v730
        %v732 = vpop.f32.mrb[0].mxu0
        %v733 = vpop.f32.mrb[0].mxu0
        %v734 = vadd.f32 0.0, %v733
        %v735 = vpop.f32.mrb[0].mxu0
        %736 = vmatprep.mubr.bf16.mxu0 0
        %737 = vmatmul.mubr.bf16.gmra.mrb[0].mxu0 %v657
        %v738 = vpop.f32.mrb[0].mxu0
        %v739 = vadd.f32 0.0, %v738
        %v740 = vpop.f32.mrb[0].mxu0
        %v741 = vpop.f32.mrb[0].mxu0
        %v742 = vadd.f32 0.0, %v741
        %v743 = vpop.f32.mrb[0].mxu0
        %744 = vmatprep.mubr.bf16.mxu0 0
        %745 = vmatmul.mubr.bf16.gmra.mrb[0].mxu0 %v660
        %v746 = vpop.f32.mrb[0].mxu0
        %v747 = vadd.f32 0.0, %v746
        %v748 = vpop.f32.mrb[0].mxu0
        %v749 = vpop.f32.mrb[0].mxu0
        %v750 = vadd.f32 0.0, %v749
        %v751 = vpop.f32.mrb[0].mxu0
        %752 = vmatprep.mubr.bf16.mxu0 0
        %753 = vmatmul.mubr.bf16.gmra.mrb[0].mxu0 %v663
        %v754 = vpop.f32.mrb[0].mxu0
        %v755 = vadd.f32 0.0, %v754
        %v756 = vpop.f32.mrb[0].mxu0
        %v757 = vpop.f32.mrb[0].mxu0
        %v758 = vadd.f32 0.0, %v757
        %v759 = vpop.f32.mrb[0].mxu0
        %760 = vmatprep.mubr.bf16.mxu0 0
        %761 = vmatmul.mubr.bf16.gmra.mrb[0].mxu0 %v666
        %v762 = vpop.f32.mrb[0].mxu0
        %v763 = vadd.f32 0.0, %v762
        %v764 = vpop.f32.mrb[0].mxu0
        %v765 = vpop.f32.mrb[0].mxu0
        %v766 = vadd.f32 0.0, %v765
        %v767 = vpop.f32.mrb[0].mxu0
        %768 = vdwg.mxu0
        %769 = vmax.xlane.f32.xlu0 %v707
        %v770 = vpop.xlane.xlu0 %769
        %771 = vmax.xlane.f32.xlu0 %v710
        %v772 = vpop.xlane.xlu0 %771
        %773 = vmax.xlane.f32.xlu0 %v715
        %v774 = vpop.xlane.xlu0 %773
        %775 = vmax.xlane.f32.xlu0 %v718
        %v776 = vpop.xlane.xlu0 %775
        %777 = vmax.xlane.f32.xlu0 %v723
        %v778 = vpop.xlane.xlu0 %777
        %779 = vmax.xlane.f32.xlu0 %v726
        %v780 = vpop.xlane.xlu0 %779
        %781 = vmax.xlane.f32.xlu0 %v731
        %v782 = vpop.xlane.xlu0 %781
        %783 = vmax.xlane.f32.xlu0 %v734
        %v784 = vpop.xlane.xlu0 %783
        %785 = vmax.xlane.f32.xlu0 %v739
        %v786 = vpop.xlane.xlu0 %785
        %787 = vmax.xlane.f32.xlu0 %v742
        %v788 = vpop.xlane.xlu0 %787
        %789 = vmax.xlane.f32.xlu0 %v747
        %v790 = vpop.xlane.xlu0 %789
        %791 = vmax.xlane.f32.xlu0 %v750
        %v792 = vpop.xlane.xlu0 %791
        %793 = vmax.xlane.f32.xlu0 %v755
        %v794 = vpop.xlane.xlu0 %793
        %795 = vmax.xlane.f32.xlu0 %v758
        %v796 = vpop.xlane.xlu0 %795
        %797 = vmax.xlane.f32.xlu0 %v763
        %v798 = vpop.xlane.xlu0 %797
        %799 = vmax.xlane.f32.xlu0 %v766
        %v800 = vpop.xlane.xlu0 %799
        %v801 = vsub.f32 %v707, %v770
        %v802 = vsub.f32 %v710, %v772
        %v803 = vsub.f32 %v715, %v774
        %v804 = vsub.f32 %v718, %v776
        %v805 = vsub.f32 %v723, %v778
        %v806 = vsub.f32 %v726, %v780
        %v807 = vsub.f32 %v731, %v782
        %v808 = vsub.f32 %v734, %v784
        %v809 = vsub.f32 %v739, %v786
        %v810 = vsub.f32 %v742, %v788
        %v811 = vsub.f32 %v747, %v790
        %v812 = vsub.f32 %v750, %v792
        %v813 = vsub.f32 %v755, %v794
        %v814 = vsub.f32 %v758, %v796
        %v815 = vsub.f32 %v763, %v798
        %v816 = vsub.f32 %v766, %v800
        %v817 = vmul.f32 %v801, 1.442695
        %v818 = vpow.pop %v817
        %v819 = vmul.f32 %v802, 1.442695
        %v820 = vpow.pop %v819
        %v821 = vmul.f32 %v803, 1.442695
        %v822 = vpow.pop %v821
        %v823 = vmul.f32 %v804, 1.442695
        %v824 = vpow.pop %v823
        %v825 = vmul.f32 %v805, 1.442695
        %v826 = vpow.pop %v825
        %v827 = vmul.f32 %v806, 1.442695
        %v828 = vpow.pop %v827
        %v829 = vmul.f32 %v807, 1.442695
        %v830 = vpow.pop %v829
        %v831 = vmul.f32 %v808, 1.442695
        %v832 = vpow.pop %v831
        %v833 = vmul.f32 %v809, 1.442695
        %v834 = vpow.pop %v833
        %v835 = vmul.f32 %v810, 1.442695
        %v836 = vpow.pop %v835
        %v837 = vmul.f32 %v811, 1.442695
        %v838 = vpow.pop %v837
        %v839 = vmul.f32 %v812, 1.442695
        %v840 = vpow.pop %v839
        %v841 = vmul.f32 %v813, 1.442695
        %v842 = vpow.pop %v841
        %v843 = vmul.f32 %v814, 1.442695
        %v844 = vpow.pop %v843
        %v845 = vmul.f32 %v815, 1.442695
        %v846 = vpow.pop %v845
        %v847 = vmul.f32 %v816, 1.442695
        %v848 = vpow.pop %v847
        %v849 = vpack.c.bf16 %v820, %v818
        %v850 = vpack.c.bf16 %v824, %v822
        %v851 = vpack.c.bf16 %v828, %v826
        %v852 = vpack.c.bf16 %v832, %v830
        %v853 = vpack.c.bf16 %v836, %v834
        %v854 = vpack.c.bf16 %v840, %v838
        %v855 = vpack.c.bf16 %v844, %v842
        %v856 = vpack.c.bf16 %v848, %v846
        %857 = vmatprep.subr.bf16.mxu0 0
        %858 = vmatpush1.bf16.xpose.msra.mxu0 %v849
        %859 = vmatprep.subr.bf16.mxu0 0
        %860 = vmatpush1.bf16.xpose.msra.mxu0 %v850
        %861 = vmatprep.subr.bf16.mxu0 0
        %862 = vmatpush1.bf16.xpose.msra.mxu0 %v851
        %863 = vmatprep.subr.bf16.mxu0 0
        %864 = vmatpush1.bf16.xpose.msra.mxu0 %v852
        %865 = vmatprep.subr.bf16.mxu0 0
        %866 = vmatpush1.bf16.xpose.msra.mxu0 %v853
        %867 = vmatprep.subr.bf16.mxu0 0
        %868 = vmatpush1.bf16.xpose.msra.mxu0 %v854
        %869 = vmatprep.subr.bf16.mxu0 0
        %870 = vmatpush1.bf16.xpose.msra.mxu0 %v855
        %871 = vmatprep.subr.bf16.mxu0 0
        %872 = vmatpush1.bf16.xpose.msra.mxu0 %v856
        %873 = vmatprep.subr.bf16.mxu0 0
        %874 = vmatpush1.bf16.xpose.msra.mxu0 0
        %875 = vmatprep.subr.bf16.mxu0 0
        %876 = vmatpush1.bf16.xpose.msra.mxu0 0
        %877 = vmatprep.subr.bf16.mxu0 0
        %878 = vmatpush1.bf16.xpose.msra.mxu0 0
        %879 = vmatprep.subr.bf16.mxu0 0
        %880 = vmatpush1.bf16.xpose.msra.mxu0 0
        %881 = vmatprep.subr.bf16.mxu0 0
        %882 = vmatpush1.bf16.xpose.msra.mxu0 0
        %883 = vmatprep.subr.bf16.mxu0 0
        %884 = vmatpush1.bf16.xpose.msra.mxu0 0
        %885 = vmatprep.subr.bf16.mxu0 0
        %886 = vmatpush1.bf16.xpose.msra.mxu0 0
        %887 = vmatprep.subr.bf16.mxu0 0
        %888 = vmatpush1.bf16.xpose.msra.mxu0 0
        %889 = vmatprep.mubr.bf16.mxu0 0
        %890 = vmatmul.mubr.bf16.gmra.mrb[0].mxu0 1065369472
        %v891 = vpop.f32.mrb[0].mxu0
        %v892 = vadd.f32 0.0, %v891
        %v893 = vpop.f32.mrb[0].mxu0
        %v894 = vpop.f32.mrb[0].mxu0
        %v895 = vpop.f32.mrb[0].mxu0
        %896 = vdwg.mxu0
        %v897 = vrcp.pop %v892
        %v898 = vlaneseq
        %v899 = vshrl.u32 %v898, 7
        %v900 = vsub.s32 0, %v899
        %v901 = vrot.slane %v897, %v900
        %v902 = vmul.f32 %v616, %v901
        %v903 = vmul.f32 %v617, %v901
        %v904 = vmul.f32 %v618, %v901
        %v905 = vmul.f32 %v619, %v901
        %v906 = vmul.f32 %v620, %v901
        %v907 = vmul.f32 %v621, %v901
        %v908 = vmul.f32 %v622, %v901
        %v909 = vmul.f32 %v623, %v901
        %v910 = vmul.f32 %v624, %v901
        %v911 = vpack.c.bf16 %v903, %v902
        %v912 = vpack.c.bf16 %v905, %v904
        %v913 = vpack.c.bf16 %v907, %v906
        %v914 = vpack.c.bf16 %v909, %v908
        %v915 = vpack.c.bf16 %v910, %v910
        %916 = vmatprep.subr.bf16.mxu0 0
        %917 = vmatpush1.bf16.msra.mxu0 %v849
        %918 = vmatprep.subr.bf16.mxu0 0
        %919 = vmatpush1.bf16.msra.mxu0 %v850
        %920 = vmatprep.subr.bf16.mxu0 0
        %921 = vmatpush1.bf16.msra.mxu0 %v851
        %922 = vmatprep.subr.bf16.mxu0 0
        %923 = vmatpush1.bf16.msra.mxu0 %v852
        %924 = vmatprep.subr.bf16.mxu0 0
        %925 = vmatpush1.bf16.msra.mxu0 %v853
        %926 = vmatprep.subr.bf16.mxu0 0
        %927 = vmatpush1.bf16.msra.mxu0 %v854
        %928 = vmatprep.subr.bf16.mxu0 0
        %929 = vmatpush1.bf16.msra.mxu0 %v855
        %930 = vmatprep.subr.bf16.mxu0 0
        %931 = vmatpush1.bf16.msra.mxu0 %v856
        %932 = vmatprep.subr.bf16.mxu0 0
        %933 = vmatpush1.bf16.msra.mxu0 0
        %934 = vmatprep.subr.bf16.mxu0 0
        %935 = vmatpush1.bf16.msra.mxu0 0
        %936 = vmatprep.subr.bf16.mxu0 0
        %937 = vmatpush1.bf16.msra.mxu0 0
        %938 = vmatprep.subr.bf16.mxu0 0
        %939 = vmatpush1.bf16.msra.mxu0 0
        %940 = vmatprep.subr.bf16.mxu0 0
        %941 = vmatpush1.bf16.msra.mxu0 0
        %942 = vmatprep.subr.bf16.mxu0 0
        %943 = vmatpush1.bf16.msra.mxu0 0
        %944 = vmatprep.subr.bf16.mxu0 0
        %945 = vmatpush1.bf16.msra.mxu0 0
        %946 = vmatprep.subr.bf16.mxu0 0
        %947 = vmatpush1.bf16.msra.mxu0 0
        %948 = vmatprep.mubr.bf16.mxu0 0
        %949 = vmatmul.mubr.bf16.gmra.mrb[0].mxu0 %v911
        %v950 = vpop.f32.mrb[0].mxu0
        %v951 = vadd.f32 0.0, %v950
        %v952 = vpop.f32.mrb[0].mxu0
        %v953 = vpop.f32.mrb[0].mxu0
        %v954 = vadd.f32 0.0, %v953
        %v955 = vpop.f32.mrb[0].mxu0
        %956 = vmatprep.mubr.bf16.mxu0 0
        %957 = vmatmul.mubr.bf16.gmra.mrb[0].mxu0 %v912
        %v958 = vpop.f32.mrb[0].mxu0
        %v959 = vadd.f32 0.0, %v958
        %v960 = vpop.f32.mrb[0].mxu0
        %v961 = vpop.f32.mrb[0].mxu0
        %v962 = vadd.f32 0.0, %v961
        %v963 = vpop.f32.mrb[0].mxu0
        %964 = vmatprep.mubr.bf16.mxu0 0
        %965 = vmatmul.mubr.bf16.gmra.mrb[0].mxu0 %v913
        %v966 = vpop.f32.mrb[0].mxu0
        %v967 = vadd.f32 0.0, %v966
        %v968 = vpop.f32.mrb[0].mxu0
        %v969 = vpop.f32.mrb[0].mxu0
        %v970 = vadd.f32 0.0, %v969
        %v971 = vpop.f32.mrb[0].mxu0
        %972 = vmatprep.mubr.bf16.mxu0 0
        %973 = vmatmul.mubr.bf16.gmra.mrb[0].mxu0 %v914
        %v974 = vpop.f32.mrb[0].mxu0
        %v975 = vadd.f32 0.0, %v974
        %v976 = vpop.f32.mrb[0].mxu0
        %v977 = vpop.f32.mrb[0].mxu0
        %v978 = vadd.f32 0.0, %v977
        %v979 = vpop.f32.mrb[0].mxu0
        %980 = vmatprep.mubr.bf16.mxu0 0
        %981 = vmatmul.mubr.bf16.gmra.mrb[0].mxu0 %v915
        %v982 = vpop.f32.mrb[0].mxu0
        %v983 = vadd.f32 0.0, %v982
        %v984 = vpop.f32.mrb[0].mxu0
        %v985 = vpop.f32.mrb[0].mxu0
        %v986 = vpop.f32.mrb[0].mxu0
        %987 = vdwg.mxu0
        // Predicated region
        $region53: #{tpu_custom_call.1} parent=47 // pred_check
          %p988 = pneg %p291
        $region54: #{tpu_custom_call.1} parent=47 // pred_check_branch
          %990 = sbr.rel (%p988) target = $region56
        $region55: #{tpu_custom_call.1} parent=47 // pred_region
          %991 = vst [vmem:[#allocation3] sm:$0xff] %v951
          %992 = vst [vmem:[#allocation3 + $0x8] sm:$0xff] %v954
          %993 = vst [vmem:[#allocation3 + $0x10] sm:$0xff] %v959
          %994 = vst [vmem:[#allocation3 + $0x18] sm:$0xff] %v962
          %995 = vst [vmem:[#allocation3 + $0x20] sm:$0xff] %v967
          %996 = vst [vmem:[#allocation3 + $0x28] sm:$0xff] %v970
          %997 = vst [vmem:[#allocation3 + $0x30] sm:$0xff] %v975
          %998 = vst [vmem:[#allocation3 + $0x38] sm:$0xff] %v978
          %999 = vst [vmem:[#allocation3 + $0x40] sm:$0xff] %v983
        $region56: #{tpu_custom_call.1} parent=47 // pred_fallthru
          _
        %p1000 = scmp.gt.s32.totalorder %s26, 0
        // Predicated region
        $region57: #{tpu_custom_call.1} parent=47 // pred_check
          %p1001 = pneg %p1000
        $region58: #{tpu_custom_call.1} parent=47 // pred_check_branch
          %1003 = sbr.rel (%p1001) target = $region60
        $region59: #{tpu_custom_call.1} parent=47 // pred_region
          %v1004 = vld [vmem:[#allocation3] sm:$0xff]
          %v1005 = vld [vmem:[#allocation3 + $0x8] sm:$0xff]
          %v1006 = vld [vmem:[#allocation3 + $0x10] sm:$0xff]
          %v1007 = vld [vmem:[#allocation3 + $0x18] sm:$0xff]
          %v1008 = vld [vmem:[#allocation3 + $0x20] sm:$0xff]
          %v1009 = vld [vmem:[#allocation3 + $0x28] sm:$0xff]
          %v1010 = vld [vmem:[#allocation3 + $0x30] sm:$0xff]
          %v1011 = vld [vmem:[#allocation3 + $0x38] sm:$0xff]
          %v1012 = vld [vmem:[#allocation3 + $0x40] sm:$0xff]
          %v1013 = vadd.f32 %v1004, %v951
          %v1014 = vadd.f32 %v1005, %v954
          %v1015 = vadd.f32 %v1006, %v959
          %v1016 = vadd.f32 %v1007, %v962
          %v1017 = vadd.f32 %v1008, %v967
          %v1018 = vadd.f32 %v1009, %v970
          %v1019 = vadd.f32 %v1010, %v975
          %v1020 = vadd.f32 %v1011, %v978
          %v1021 = vadd.f32 %v1012, %v983
          %1022 = vst [vmem:[#allocation3] sm:$0xff] %v1013
          %1023 = vst [vmem:[#allocation3 + $0x8] sm:$0xff] %v1014
          %1024 = vst [vmem:[#allocation3 + $0x10] sm:$0xff] %v1015
          %1025 = vst [vmem:[#allocation3 + $0x18] sm:$0xff] %v1016
          %1026 = vst [vmem:[#allocation3 + $0x20] sm:$0xff] %v1017
          %1027 = vst [vmem:[#allocation3 + $0x28] sm:$0xff] %v1018
          %1028 = vst [vmem:[#allocation3 + $0x30] sm:$0xff] %v1019
          %1029 = vst [vmem:[#allocation3 + $0x38] sm:$0xff] %v1020
          %1030 = vst [vmem:[#allocation3 + $0x40] sm:$0xff] %v1021
        $region60: #{tpu_custom_call.1} parent=47 // pred_fallthru
          _
        // Predicated region
        $region61: #{tpu_custom_call.1} parent=47 // pred_check
          %p1031 = pneg %p291
        $region62: #{tpu_custom_call.1} parent=47 // pred_check_branch
          %1033 = sbr.rel (%p1031) target = $region64
        $region63: #{tpu_custom_call.1} parent=47 // pred_region
          %v1034 = vld [vmem:[%s288] sm:$0xff]
          %v1035 = vld [vmem:[%s288 + $0x8] sm:$0xff]
          %v1036 = vld [vmem:[%s288 + $0x10] sm:$0xff]
          %v1037 = vld [vmem:[%s288 + $0x18] sm:$0xff]
          %v1038 = vld [vmem:[%s288 + $0x20] sm:$0xff]
          %v1039 = vld [vmem:[%s288 + $0x28] sm:$0xff]
          %v1040 = vld [vmem:[%s288 + $0x30] sm:$0xff]
          %v1041 = vld [vmem:[%s288 + $0x38] sm:$0xff]
          %v1042 = vld [vmem:[#allocation3] sm:$0xff]
          %v1043 = vld [vmem:[#allocation3 + $0x8] sm:$0xff]
          %v1044 = vld [vmem:[#allocation3 + $0x10] sm:$0xff]
          %v1045 = vld [vmem:[#allocation3 + $0x18] sm:$0xff]
          %v1046 = vld [vmem:[#allocation3 + $0x20] sm:$0xff]
          %v1047 = vld [vmem:[#allocation3 + $0x28] sm:$0xff]
          %v1048 = vld [vmem:[#allocation3 + $0x30] sm:$0xff]
          %v1049 = vld [vmem:[#allocation3 + $0x38] sm:$0xff]
          %v1050 = vld [vmem:[#allocation3 + $0x40] sm:$0x1]
          %v1051 = vadd.f32 %v1050, 1e-09
          %v1052 = vlaneseq
          %v1053 = vshrl.u32 %v1052, 7
          %v1054 = vsub.s32 0, %v1053
          %v1055 = vrot.slane %v1051, %v1054
          %v1056 = vrcp.pop %v1055
          %v1057 = vmul.f32 %v1042, %v1056
          %v1058 = vmul.f32 %v1043, %v1056
          %v1059 = vmul.f32 %v1044, %v1056
          %v1060 = vmul.f32 %v1045, %v1056
          %v1061 = vmul.f32 %v1046, %v1056
          %v1062 = vmul.f32 %v1047, %v1056
          %v1063 = vmul.f32 %v1048, %v1056
          %v1064 = vmul.f32 %v1049, %v1056
          %v1065 = vld [vmem:[%s5] sm:$0xff]
          %v1066 = vld [vmem:[%s5 + $0x8] sm:$0xff]
          %v1067 = vld [vmem:[%s5 + $0x10] sm:$0xff]
          %v1068 = vld [vmem:[%s5 + $0x18] sm:$0xff]
          %v1069 = vld [vmem:[%s5 + $0x20] sm:$0xff]
          %v1070 = vld [vmem:[%s5 + $0x28] sm:$0xff]
          %v1071 = vld [vmem:[%s5 + $0x30] sm:$0xff]
          %v1072 = vld [vmem:[%s5 + $0x38] sm:$0xff]
          %v1073 = vsub.f32 %v1034, %v1057
          %v1074 = vsub.f32 %v1035, %v1058
          %v1075 = vsub.f32 %v1036, %v1059
          %v1076 = vsub.f32 %v1037, %v1060
          %v1077 = vsub.f32 %v1038, %v1061
          %v1078 = vsub.f32 %v1039, %v1062
          %v1079 = vsub.f32 %v1040, %v1063
          %v1080 = vsub.f32 %v1041, %v1064
          %v1081 = vld [vmem:[%s6] sm:$0xff]
          %v1082 = vld [vmem:[%s6 + $0x8] sm:$0xff]
          %v1083 = vld [vmem:[%s6 + $0x10] sm:$0xff]
          %v1084 = vld [vmem:[%s6 + $0x18] sm:$0xff]
          %v1085 = vld [vmem:[%s6 + $0x20] sm:$0xff]
          %v1086 = vld [vmem:[%s6 + $0x28] sm:$0xff]
          %v1087 = vld [vmem:[%s6 + $0x30] sm:$0xff]
          %v1088 = vld [vmem:[%s6 + $0x38] sm:$0xff]
          %1090 = vset.pattern.permute.xlu0 0
          %1091 = vperm.xlu0 %1090, %v1081
          %v1092 = vpop.permute.xlu0 %1091
          %1095 = vset.pattern.permute.xlu0 0
          %1096 = vperm.xlu0 %1095, %v1082
          %v1097 = vpop.permute.xlu0 %1096
          %1100 = vset.pattern.permute.xlu0 0
          %1101 = vperm.xlu0 %1100, %v1083
          %v1102 = vpop.permute.xlu0 %1101
          %1105 = vset.pattern.permute.xlu0 0
          %1106 = vperm.xlu0 %1105, %v1084
          %v1107 = vpop.permute.xlu0 %1106
          %1110 = vset.pattern.permute.xlu0 0
          %1111 = vperm.xlu0 %1110, %v1085
          %v1112 = vpop.permute.xlu0 %1111
          %1115 = vset.pattern.permute.xlu0 0
          %1116 = vperm.xlu0 %1115, %v1086
          %v1117 = vpop.permute.xlu0 %1116
          %1120 = vset.pattern.permute.xlu0 0
          %1121 = vperm.xlu0 %1120, %v1087
          %v1122 = vpop.permute.xlu0 %1121
          %1125 = vset.pattern.permute.xlu0 0
          %1126 = vperm.xlu0 %1125, %v1088
          %v1127 = vpop.permute.xlu0 %1126
          %v1130 = vsel %vm469, %v1065, 0
          %v1133 = vsel %vm469, %v1066, 0
          %v1136 = vsel %vm469, %v1067, 0
          %v1139 = vsel %vm469, %v1068, 0
          %v1142 = vsel %vm469, %v1069, 0
          %v1145 = vsel %vm469, %v1070, 0
          %v1148 = vsel %vm469, %v1071, 0
          %v1151 = vsel %vm469, %v1072, 0
          %1153 = vmatprep.subr.mxu0 0.0
          %1154 = vmatpush1.msra.mxu0 %v1073
          %1155 = vmatprep.subr.mxu0 0.0
          %1156 = vmatpush1.msra.mxu0 %v1074
          %1157 = vmatprep.subr.mxu0 0.0
          %1158 = vmatpush1.msra.mxu0 %v1075
          %1159 = vmatprep.subr.mxu0 0.0
          %1160 = vmatpush1.msra.mxu0 %v1076
          %1161 = vmatprep.subr.mxu0 0.0
          %1162 = vmatpush1.msra.mxu0 %v1077
          %1163 = vmatprep.subr.mxu0 0.0
          %1164 = vmatpush1.msra.mxu0 %v1078
          %1165 = vmatprep.subr.mxu0 0.0
          %1166 = vmatpush1.msra.mxu0 %v1079
          %1167 = vmatprep.subr.mxu0 0.0
          %1168 = vmatpush1.msra.mxu0 %v1080
          %1169 = vmatprep.subr.mxu0 0.0
          %1170 = vmatpush1.msra.mxu0 0.0
          %1171 = vmatprep.subr.mxu0 0.0
          %1172 = vmatpush1.msra.mxu0 0.0
          %1173 = vmatprep.subr.mxu0 0.0
          %1174 = vmatpush1.msra.mxu0 0.0
          %1175 = vmatprep.subr.mxu0 0.0
          %1176 = vmatpush1.msra.mxu0 0.0
          %1177 = vmatprep.subr.mxu0 0.0
          %1178 = vmatpush1.msra.mxu0 0.0
          %1179 = vmatprep.subr.mxu0 0.0
          %1180 = vmatpush1.msra.mxu0 0.0
          %1181 = vmatprep.subr.mxu0 0.0
          %1182 = vmatpush1.msra.mxu0 0.0
          %1183 = vmatprep.subr.mxu0 0.0
          %1184 = vmatpush1.msra.mxu0 0.0
          %1185 = vmatprep.subr.mxu0 0.0
          %1186 = vmatpush1.msra.mxu0 0.0
          %1187 = vmatprep.subr.mxu0 0.0
          %1188 = vmatpush1.msra.mxu0 0.0
          %1189 = vmatprep.subr.mxu0 0.0
          %1190 = vmatpush1.msra.mxu0 0.0
          %1191 = vmatprep.subr.mxu0 0.0
          %1192 = vmatpush1.msra.mxu0 0.0
          %1193 = vmatprep.subr.mxu0 0.0
          %1194 = vmatpush1.msra.mxu0 0.0
          %1195 = vmatprep.subr.mxu0 0.0
          %1196 = vmatpush1.msra.mxu0 0.0
          %1197 = vmatprep.subr.mxu0 0.0
          %1198 = vmatpush1.msra.mxu0 0.0
          %1199 = vmatprep.subr.mxu0 0.0
          %1200 = vmatpush1.msra.mxu0 0.0
          %1201 = vmatprep.subr.mxu0 0.0
          %1202 = vmatpush1.msra.mxu0 0.0
          %1203 = vmatprep.subr.mxu0 0.0
          %1204 = vmatpush1.msra.mxu0 0.0
          %1205 = vmatprep.subr.mxu0 0.0
          %1206 = vmatpush1.msra.mxu0 0.0
          %1207 = vmatprep.subr.mxu0 0.0
          %1208 = vmatpush1.msra.mxu0 0.0
          %1209 = vmatprep.subr.mxu0 0.0
          %1210 = vmatpush1.msra.mxu0 0.0
          %1211 = vmatprep.subr.mxu0 0.0
          %1212 = vmatpush1.msra.mxu0 0.0
          %1213 = vmatprep.subr.mxu0 0.0
          %1214 = vmatpush1.msra.mxu0 0.0
          %1215 = vmatprep.subr.mxu0 0.0
          %1216 = vmatpush1.msra.mxu0 0.0
          %1217 = vmatprep.mubr.f32.mxu0 0.0
          %1218 = vmatmul.mubr.f32.gmra.mrb[0].mxu0 %v1130
          %v1219 = vpop.f32.mrb[0].mxu0
          %v1220 = vadd.f32 %v1092, %v1219
          %v1221 = vpop.f32.mrb[0].mxu0
          %1222 = vmatprep.mubr.f32.mxu0 0.0
          %1223 = vmatmul.mubr.f32.gmra.mrb[0].mxu0 %v1133
          %v1224 = vpop.f32.mrb[0].mxu0
          %v1225 = vadd.f32 %v1097, %v1224
          %v1226 = vpop.f32.mrb[0].mxu0
          %1227 = vmatprep.mubr.f32.mxu0 0.0
          %1228 = vmatmul.mubr.f32.gmra.mrb[0].mxu0 %v1136
          %v1229 = vpop.f32.mrb[0].mxu0
          %v1230 = vadd.f32 %v1102, %v1229
          %v1231 = vpop.f32.mrb[0].mxu0
          %1232 = vmatprep.mubr.f32.mxu0 0.0
          %1233 = vmatmul.mubr.f32.gmra.mrb[0].mxu0 %v1139
          %v1234 = vpop.f32.mrb[0].mxu0
          %v1235 = vadd.f32 %v1107, %v1234
          %v1236 = vpop.f32.mrb[0].mxu0
          %1237 = vmatprep.mubr.f32.mxu0 0.0
          %1238 = vmatmul.mubr.f32.gmra.mrb[0].mxu0 %v1142
          %v1239 = vpop.f32.mrb[0].mxu0
          %v1240 = vadd.f32 %v1112, %v1239
          %v1241 = vpop.f32.mrb[0].mxu0
          %1242 = vmatprep.mubr.f32.mxu0 0.0
          %1243 = vmatmul.mubr.f32.gmra.mrb[0].mxu0 %v1145
          %v1244 = vpop.f32.mrb[0].mxu0
          %v1245 = vadd.f32 %v1117, %v1244
          %v1246 = vpop.f32.mrb[0].mxu0
          %1247 = vmatprep.mubr.f32.mxu0 0.0
          %1248 = vmatmul.mubr.f32.gmra.mrb[0].mxu0 %v1148
          %v1249 = vpop.f32.mrb[0].mxu0
          %v1250 = vadd.f32 %v1122, %v1249
          %v1251 = vpop.f32.mrb[0].mxu0
          %1252 = vmatprep.mubr.f32.mxu0 0.0
          %1253 = vmatmul.mubr.f32.gmra.mrb[0].mxu0 %v1151
          %v1254 = vpop.f32.mrb[0].mxu0
          %v1255 = vadd.f32 %v1127, %v1254
          %v1256 = vpop.f32.mrb[0].mxu0
          %1257 = vdwg.mxu0
          %v1258 = vmax.f32 %v1220, 0.0
          %v1259 = vmax.f32 %v1225, 0.0
          %v1260 = vmax.f32 %v1230, 0.0
          %v1261 = vmax.f32 %v1235, 0.0
          %v1262 = vmax.f32 %v1240, 0.0
          %v1263 = vmax.f32 %v1245, 0.0
          %v1264 = vmax.f32 %v1250, 0.0
          %v1265 = vmax.f32 %v1255, 0.0
          %v1266 = vadd.f32 %v1034, %v1258
          %v1267 = vadd.f32 %v1035, %v1259
          %v1268 = vadd.f32 %v1036, %v1260
          %v1269 = vadd.f32 %v1037, %v1261
          %v1270 = vadd.f32 %v1038, %v1262
          %v1271 = vadd.f32 %v1039, %v1263
          %v1272 = vadd.f32 %v1040, %v1264
          %v1273 = vadd.f32 %v1041, %v1265
          %1274 = vst [vmem:[%s283] sm:$0xff] %v1266
          %1275 = vst [vmem:[%s283 + $0x8] sm:$0xff] %v1267
          %1276 = vst [vmem:[%s283 + $0x10] sm:$0xff] %v1268
          %1277 = vst [vmem:[%s283 + $0x18] sm:$0xff] %v1269
          %1278 = vst [vmem:[%s283 + $0x20] sm:$0xff] %v1270
          %1279 = vst [vmem:[%s283 + $0x28] sm:$0xff] %v1271
          %1280 = vst [vmem:[%s283 + $0x30] sm:$0xff] %v1272
          %1281 = vst [vmem:[%s283 + $0x38] sm:$0xff] %v1273
        $region64: #{tpu_custom_call.1} parent=47 // pred_fallthru
          _
        %s1282 = sand.u32 %s193, 1
        %s1283 = scalar_lea.sflag [#allocation5], %s1282
        %s1284 = sand.u32 %s193, 1
        %s1285 = smul.addr %s1284, 64
        %s1286 = scalar_lea.vmem [#allocation4], %s1285
        // Predicated region
        $region65: #{tpu_custom_call.1} parent=47 // pred_check
          %p1287 = pneg %p203
        $region66: #{tpu_custom_call.1} parent=47 // pred_check_branch
          %1289 = sbr.rel (%p1287) target = $region68
        $region67: #{tpu_custom_call.1} parent=47 // pred_region
          %s1291 = ssub.s32 1024, 1024
          %1292 = vsyncadd %s1283, %s1291
          %s1293 = smul.addr %s25, 8
          %s1294 = smul.addr %s1293, 128
          %s1295 = scalar_lea.hbm %s7, %s1294
          %s1296 = sshll.u32 %s1286, 4
          %s1297 = int_to_ptr.vmem [resolvable:$true] %s1296
          %1302 = dma.vmem_to_hbm [thread:$0]  %s1297, 1024, %s1295, %s1283, 128, 128, 8
        $region68: #{tpu_custom_call.1} parent=47 // pred_fallthru
          _
      $region48: #{tpu_custom_call.1} parent=5 // pred_fallthru
        _
      %p1303 = scmp.le.s32.totalorder 2, %s16
      // Predicated region
      $region69: #{tpu_custom_call.1} parent=5 // pred_check
        %p1304 = pneg %p1303
      $region70: #{tpu_custom_call.1} parent=5 // pred_check_branch
        %1306 = sbr.rel (%p1304) target = $region72
      $region71: #{tpu_custom_call.1} parent=5 // pred_region
        %s1307 = ssub.s32 %s16, 2
        // Predicated region
        $region73: #{tpu_custom_call.1} parent=71 // pred_check
          %p1308 = pneg %p209
        $region74: #{tpu_custom_call.1} parent=71 // pred_check_branch
          %1310 = sbr.rel (%p1308) target = $region76
        $region75: #{tpu_custom_call.1} parent=71 // pred_region
          %s1311 = sand.u32 %s194, 1
          %s1312 = scalar_lea.sflag [#allocation5], %s1311
          %s1313 = sand.u32 %s194, 1
          %s1314 = smul.addr %s1313, 64
          %s1315 = scalar_lea.vmem [#allocation4], %s1314
          %1316 = dma.done %s1312, 1024
        $region76: #{tpu_custom_call.1} parent=71 // pred_fallthru
          _
      $region72: #{tpu_custom_call.1} parent=5 // pred_fallthru
        _
    $region6: #{tpu_custom_call.1} parent=1 // loop_footer
      %s20 = sadd.s32 1, %s16
    $region7: #{tpu_custom_call.1} parent=1 // loop_footer_branch
      %15 = sbr.rel target = $region3
    $region8: #{tpu_custom_call.1} parent=1 // loop_exit
      _
    %1317 = vsyncpa [#allocation5], 1
    %s1318 = scalar_lea.sflag [#allocation5], 1
    %1319 = vsyncpa %s1318, 1

</llo_original>
